<compile_context>
chip_gen: v6e
topology: v6e:2x2x1
jax: 0.10.0
libtpu: 0.0.40
codegen_flags: <defaults>
</compile_context>

<pallas_src>
import functools
import math

import jax
import jax.numpy as jnp
from jax import lax
from jax.experimental import pallas as pl
from jax.experimental.pallas import tpu as pltpu


def _mhca_kernel(x_ref, y_ref,
                 wq_ref, bq_ref, wkv_ref, bkv_ref, wo_ref, bo_ref,
                 o_ref,
                 q_scr, m_scr, l_scr, acc_scr,
                 *, scale, num_heads, query_dim, value_dim, compute_dtype):
    H, Dq, Dv = num_heads, query_dim, value_dim
    s_idx = pl.program_id(2)
    last_s = pl.num_programs(2) - 1

    # ---- init: project Q once per (batch, L-tile); reset flash state. -------
    @pl.when(s_idx == 0)
    def _init():
        x = x_ref[0]                                             # (Lt, E) bf16
        q = jnp.dot(x, wq_ref[...], preferred_element_type=jnp.float32)
        q = q + bq_ref[...]                                      # (Lt, H*Dq) f32
        q_scr[...] = (q * scale).astype(compute_dtype)           # fold 1/sqrt(Dq)
        m_scr[...] = jnp.full(m_scr.shape, -jnp.inf, dtype=m_scr.dtype)
        l_scr[...] = jnp.zeros(l_scr.shape, dtype=l_scr.dtype)
        acc_scr[...] = jnp.zeros(acc_scr.shape, dtype=acc_scr.dtype)

    # ---- fused K|V projection for this S tile. ------------------------------
    y = y_ref[0]                                                 # (St, Ec) bf16
    kv = jnp.dot(y, wkv_ref[...], preferred_element_type=jnp.float32)
    kv = (kv + bkv_ref[...]).astype(compute_dtype)               # (St, H*(Dq+Dv))
    k = kv[:, : H * Dq]                                          # (St, H*Dq)
    v = kv[:, H * Dq:]                                           # (St, H*Dv)

    # ---- per-head online-softmax update (H small & static -> unrolled). -----
    for h in range(H):
        qh = q_scr[:, h * Dq:(h + 1) * Dq]                       # (Lt, Dq) bf16
        kh = k[:, h * Dq:(h + 1) * Dq]                           # (St, Dq) bf16
        vh = v[:, h * Dv:(h + 1) * Dv]                           # (St, Dv) bf16
        # Contract last dims of both operands -> no explicit K transpose.
        s = lax.dot_general(qh, kh, (((1,), (1,)), ((), ())),
                            preferred_element_type=jnp.float32)  # (Lt, St) f32
        # TODO(synk): optional attn_mask bias ([..., L, S] / [..., H, L, S])
        # would be added to `s` here; not wired in (eval-mode, no mask).
        m_prev = m_scr[h]                                        # (Lt, 1)
        m_new = jnp.maximum(m_prev, jnp.max(s, axis=-1, keepdims=True))
        alpha = jnp.exp(m_prev - m_new)                          # (Lt, 1)
        p = jnp.exp(s - m_new)                                   # (Lt, St) f32
        l_scr[h] = alpha * l_scr[h] + jnp.sum(p, axis=-1, keepdims=True)
        acc_scr[h] = alpha * acc_scr[h] + jnp.dot(
            p.astype(compute_dtype), vh, preferred_element_type=jnp.float32)
        m_scr[h] = m_new

    # ---- finalize: normalize + per-head output projection (lane-dense E). ---
    @pl.when(s_idx == last_s)
    def _finalize():
        out = jnp.zeros(o_ref.shape[1:], dtype=jnp.float32)      # (Lt, E)
        for h in range(H):
            inv_l = pl.reciprocal(l_scr[h], approx=False)        # exact, parity
            attn_h = (acc_scr[h] * inv_l).astype(compute_dtype)  # (Lt, Dv)
            out = out + jnp.dot(attn_h, wo_ref[h],
                                preferred_element_type=jnp.float32)
        out = out + bo_ref[...]                                  # (1, E) broadcast
        # At production E >= 128 this store is lane-dense automatically; at the
        # toy E=32 it is a masked store (not worth tuning at toy sizes).
        o_ref[0] = out.astype(o_ref.dtype)
    # TODO(synk): dropout (training-mode only in the PyTorch module) is not
    # implemented; this kernel is the eval-mode forward.


def multihead_cross_attention(x, y, params, *, num_heads, query_dim, value_dim,
                              l_tile=None, s_tile=None,
                              compute_dtype=jnp.bfloat16):
    """Eval-mode forward of MultiheadCrossAttention (no attn_mask, no dropout)."""
    B, L, E = x.shape
    _, S, Ec = y.shape
    H, Dq, Dv = num_heads, query_dim, value_dim

    # Tile sizes: 256-multiples suit the v6e/v7x MXU (2x256x256); use
    # 128-multiples on v5e.  On v7x (64 MiB VMEM) halve these if the
    # double-buffered x/y tiles + resident weights exceed the budget.
    if l_tile is None:
        l_tile = min(L, 256)
    if s_tile is None:
        s_tile = min(S, 256)
    assert L % l_tile == 0 and S % s_tile == 0, "L/S must be divisible by tiles"

    # bf16 MXU operands (f32 accumulation in-kernel); biases stay f32.
    xc = x.astype(compute_dtype)
    yc = y.astype(compute_dtype)
    wq = params["wq"].astype(compute_dtype)                       # (E, H*Dq)
    wkv = jnp.concatenate([params["wk"], params["wv"]], axis=1)   # (Ec, H*(Dq+Dv))
    wkv = wkv.astype(compute_dtype)
    wo = params["wo"].reshape(H, Dv, E).astype(compute_dtype)     # head-major rows
    bq = params["bq"].reshape(1, H * Dq).astype(jnp.float32)
    bkv = jnp.concatenate([params["bk"], params["bv"]]).reshape(
        1, H * (Dq + Dv)).astype(jnp.float32)
    bo = params["bo"].reshape(1, E).astype(jnp.float32)

    scale = 1.0 / math.sqrt(Dq)
    kernel = functools.partial(
        _mhca_kernel, scale=scale, num_heads=H, query_dim=Dq, value_dim=Dv,
        compute_dtype=compute_dtype)

    grid = (B, L // l_tile, S // s_tile)
    const2 = lambda b, l, s: (0, 0)
    const3 = lambda b, l, s: (0, 0, 0)
    once = pl.Buffered(1)      # resident weights: single-buffered, DMA'd once

    grid_spec = pltpu.PrefetchScalarGridSpec(
        num_scalar_prefetch=0,
        grid=grid,
        in_specs=[
            pl.BlockSpec((1, l_tile, E),  lambda b, l, s: (b, l, 0)),      # x
            pl.BlockSpec((1, s_tile, Ec), lambda b, l, s: (b, s, 0)),      # y
            pl.BlockSpec((E, H * Dq),         const2, pipeline_mode=once), # wq
            pl.BlockSpec((1, H * Dq),         const2, pipeline_mode=once), # bq
            pl.BlockSpec((Ec, H * (Dq + Dv)), const2, pipeline_mode=once), # wk|wv
            pl.BlockSpec((1, H * (Dq + Dv)),  const2, pipeline_mode=once), # bk|bv
            pl.BlockSpec((H, Dv, E),          const3, pipeline_mode=once), # wo
            pl.BlockSpec((1, E),              const2, pipeline_mode=once), # bo
        ],
        out_specs=pl.BlockSpec((1, l_tile, E), lambda b, l, s: (b, l, 0)),
        scratch_shapes=[
            pltpu.VMEM((l_tile, H * Dq), compute_dtype),   # cached scaled Q
            pltpu.VMEM((H, l_tile, 1), jnp.float32),       # running max  m
            pltpu.VMEM((H, l_tile, 1), jnp.float32),       # running sum  l
            pltpu.VMEM((H, l_tile, Dv), jnp.float32),      # unnormalized acc
        ],
    )

    return pl.pallas_call(
        kernel,
        out_shape=jax.ShapeDtypeStruct((B, L, E), x.dtype),
        grid_spec=grid_spec,
        compiler_params=pltpu.CompilerParams(
            dimension_semantics=("parallel", "parallel", "arbitrary"),
            # Explicit scoped-VMEM budget: above the 32 MiB default scoped
            # limit, under v7x's 64 MiB physical VMEM with headroom.
            vmem_limit_bytes=48 * 1024 * 1024,
        ),
    )(xc, yc, wq, bq, wkv, bkv, wo, bo)


def _reference(x, y, params, *, num_heads, query_dim, value_dim):
    """Plain-JAX reproduction of the PyTorch forward (eval mode, no mask)."""
    B, L, E = x.shape
    _, S, Ec = y.shape
    H, Dq, Dv = num_heads, query_dim, value_dim
    q = (x @ params["wq"] + params["bq"]).reshape(B, L, H, Dq).transpose(0, 2, 1, 3)
    k = (y @ params["wk"] + params["bk"]).reshape(B, S, H, Dq).transpose(0, 2, 1, 3)
    v = (y @ params["wv"] + params["bv"]).reshape(B, S, H, Dv).transpose(0, 2, 1, 3)
    s = jnp.einsum("bhld,bhsd->bhls", q, k) / math.sqrt(Dq)
    p = jax.nn.softmax(s, axis=-1)
    o = jnp.einsum("bhls,bhsd->bhld", p, v)               # (B, H, L, Dv)
    o = o.transpose(0, 2, 1, 3).reshape(B, L, H * Dv)
    return o @ params["wo"] + params["bo"]


if __name__ == "__main__":
    # Module config (toy sizes — the kernel here is fixed-overhead/DMA-bound;
    # the tiling/bf16 changes only pay off at production L/S/E).
    E = 32        # embedding_dim
    Ec = 32       # context_embedding_dim (defaults to embedding_dim)
    Dq = 16       # query_dim
    Dv = 16       # value_dim
    H = 2         # num_heads
    B, L, S = 2, 8, 8

    key = jax.random.PRNGKey(0)
    ks = jax.random.split(key, 10)

    # Deterministic synthetic parameters (stored with x @ W + b convention,
    # i.e. W = torch_weight.T).
    params = {
        "wq": jax.random.normal(ks[0], (E, H * Dq), jnp.float32) * 0.05,
        "bq": jax.random.normal(ks[1], (H * Dq,),   jnp.float32) * 0.05,
        "wk": jax.random.normal(ks[2], (Ec, H * Dq), jnp.float32) * 0.05,
        "bk": jax.random.normal(ks[3], (H * Dq,),   jnp.float32) * 0.05,
        "wv": jax.random.normal(ks[4], (Ec, H * Dv), jnp.float32) * 0.05,
        "bv": jax.random.normal(ks[5], (H * Dv,),   jnp.float32) * 0.05,
        "wo": jax.random.normal(ks[6], (H * Dv, E), jnp.float32) * 0.05,
        "bo": jax.random.normal(ks[7], (E,),        jnp.float32) * 0.05,
    }

    x = jax.random.normal(ks[8], (B, L, E), jnp.float32)
    y = jax.random.normal(ks[9], (B, S, Ec), jnp.float32)

    out = multihead_cross_attention(
        x, y, params, num_heads=H, query_dim=Dq, value_dim=Dv)
    out = jax.block_until_ready(out)

    # Reference computed on the same bf16-rounded x/y/weights the kernel sees
    # (biases stay f32, matching the kernel), so only in-kernel bf16 rounding
    # of intermediates remains as error.
    rb = lambda t: t.astype(jnp.bfloat16).astype(jnp.float32)
    params_r = dict(params)
    for name in ("wq", "wk", "wv", "wo"):
        params_r[name] = rb(params[name])
    ref = _reference(rb(x), rb(y), params_r,
                     num_heads=H, query_dim=Dq, value_dim=Dv)

    assert out.shape == (B, L, E)
    assert jnp.allclose(out, ref, atol=1e-2, rtol=1e-2), "mismatch vs reference"

    print("KERNEL_OK")
</pallas_src>

<mosaic_0001>
module attributes {stable_mosaic.version = 11 : i64} {
  func.func @_mhca_kernel(%arg0: i32, %arg1: i32, %arg2: i32, %arg3: memref<1x8x32xbf16, #tpu.memory_space<vmem>>, %arg4: memref<1x8x32xbf16, #tpu.memory_space<vmem>>, %arg5: memref<32x32xbf16, #tpu.memory_space<vmem>>, %arg6: memref<1x32xf32, #tpu.memory_space<vmem>>, %arg7: memref<32x64xbf16, #tpu.memory_space<vmem>>, %arg8: memref<1x64xf32, #tpu.memory_space<vmem>>, %arg9: memref<2x16x32xbf16, #tpu.memory_space<vmem>>, %arg10: memref<1x32xf32, #tpu.memory_space<vmem>>, %arg11: memref<1x8x32xf32, #tpu.memory_space<vmem>>, %arg12: memref<8x32xbf16, #tpu.memory_space<vmem>>, %arg13: memref<2x8x1xf32, #tpu.memory_space<vmem>>, %arg14: memref<2x8x1xf32, #tpu.memory_space<vmem>>, %arg15: memref<2x8x16xf32, #tpu.memory_space<vmem>>) attributes {dimension_semantics = [#tpu.dimension_semantics<parallel>, #tpu.dimension_semantics<parallel>, #tpu.dimension_semantics<arbitrary>], iteration_bounds = array<i64: 2, 1, 1>, scalar_prefetch = 0 : i64, scratch_operands = 4 : i64, tpu.core_type = #tpu.core_type<tc>, window_params = [{transform_indices = @transform_0, window_bounds = array<i64: 1, 8, 32>}, {transform_indices = @transform_1, window_bounds = array<i64: 1, 8, 32>}, {pipeline_mode = #tpu.pipeline_mode<synchronous>, transform_indices = @transform_2, window_bounds = array<i64: 32, 32>}, {pipeline_mode = #tpu.pipeline_mode<synchronous>, transform_indices = @transform_3, window_bounds = array<i64: 1, 32>}, {pipeline_mode = #tpu.pipeline_mode<synchronous>, transform_indices = @transform_4, window_bounds = array<i64: 32, 64>}, {pipeline_mode = #tpu.pipeline_mode<synchronous>, transform_indices = @transform_5, window_bounds = array<i64: 1, 64>}, {pipeline_mode = #tpu.pipeline_mode<synchronous>, transform_indices = @transform_6, window_bounds = array<i64: 2, 16, 32>}, {pipeline_mode = #tpu.pipeline_mode<synchronous>, transform_indices = @transform_7, window_bounds = array<i64: 1, 32>}, {transform_indices = @transform_8, window_bounds = array<i64: 1, 8, 32>}]} {
    %c0_i32 = arith.constant 0 : i32
    %0 = arith.cmpi eq, %arg2, %c0_i32 : i32
    %1 = arith.extui %0 : i1 to i32
    %c0_i32_0 = arith.constant 0 : i32
    %2 = arith.cmpi ne, %1, %c0_i32_0 : i32
    scf.if %2 {
      %c0_55 = arith.constant 0 : index
      %c0_56 = arith.constant 0 : index
      %c0_57 = arith.constant 0 : index
      %88 = vector.load %arg3[%c0_55, %c0_56, %c0_57] : memref<1x8x32xbf16, #tpu.memory_space<vmem>>, vector<1x8x32xbf16>
      %89 = vector.shape_cast %88 : vector<1x8x32xbf16> to vector<8x32xbf16>
      %c0_58 = arith.constant 0 : index
      %c0_59 = arith.constant 0 : index
      %90 = vector.load %arg5[%c0_58, %c0_59] : memref<32x32xbf16, #tpu.memory_space<vmem>>, vector<32x32xbf16>
      %cst_60 = arith.constant dense<0.000000e+00> : vector<8x32xf32>
      %91 = tpu.matmul %89, %90, %cst_60 {dimension_numbers = #tpu.dot_dimension_numbers<[1], [0], [0], [1], [0, 0, 1, 1], [], []>} : vector<8x32xbf16>, vector<32x32xbf16>, vector<8x32xf32> -> vector<8x32xf32>
      %c0_61 = arith.constant 0 : index
      %c0_62 = arith.constant 0 : index
      %92 = vector.load %arg6[%c0_61, %c0_62] : memref<1x32xf32, #tpu.memory_space<vmem>>, vector<1x32xf32>
      %93 = vector.broadcast %92 : vector<1x32xf32> to vector<8x32xf32>
      %94 = arith.addf %91, %93 : vector<8x32xf32>
      %cst_63 = arith.constant 2.500000e-01 : f32
      %95 = vector.broadcast %cst_63 : f32 to vector<8x32xf32>
      %96 = arith.mulf %94, %95 : vector<8x32xf32>
      %97 = arith.truncf %96 : vector<8x32xf32> to vector<8x32xbf16>
      %c0_64 = arith.constant 0 : index
      %c0_65 = arith.constant 0 : index
      %98 = vector.load %arg12[%c0_64, %c0_65] : memref<8x32xbf16, #tpu.memory_space<vmem>>, vector<8x32xbf16>
      tpu.vector_store %arg12[%c0_64, %c0_65], %97 {strides = array<i32>} : memref<8x32xbf16, #tpu.memory_space<vmem>>, vector<8x32xbf16>,
      %cst_66 = arith.constant 0xFF800000 : f32
      %99 = vector.broadcast %cst_66 : f32 to vector<2x8x1xf32>
      %c0_67 = arith.constant 0 : index
      %c0_68 = arith.constant 0 : index
      %c0_69 = arith.constant 0 : index
      %100 = vector.load %arg13[%c0_67, %c0_68, %c0_69] : memref<2x8x1xf32, #tpu.memory_space<vmem>>, vector<2x8x1xf32>
      tpu.vector_store %arg13[%c0_67, %c0_68, %c0_69], %99 {strides = array<i32>} : memref<2x8x1xf32, #tpu.memory_space<vmem>>, vector<2x8x1xf32>,
      %cst_70 = arith.constant 0.000000e+00 : f32
      %101 = vector.broadcast %cst_70 : f32 to vector<2x8x1xf32>
      %c0_71 = arith.constant 0 : index
      %c0_72 = arith.constant 0 : index
      %c0_73 = arith.constant 0 : index
      %102 = vector.load %arg14[%c0_71, %c0_72, %c0_73] : memref<2x8x1xf32, #tpu.memory_space<vmem>>, vector<2x8x1xf32>
      tpu.vector_store %arg14[%c0_71, %c0_72, %c0_73], %101 {strides = array<i32>} : memref<2x8x1xf32, #tpu.memory_space<vmem>>, vector<2x8x1xf32>,
      %cst_74 = arith.constant 0.000000e+00 : f32
      %103 = vector.broadcast %cst_74 : f32 to vector<2x8x16xf32>
      %c0_75 = arith.constant 0 : index
      %c0_76 = arith.constant 0 : index
      %c0_77 = arith.constant 0 : index
      %104 = vector.load %arg15[%c0_75, %c0_76, %c0_77] : memref<2x8x16xf32, #tpu.memory_space<vmem>>, vector<2x8x16xf32>
      tpu.vector_store %arg15[%c0_75, %c0_76, %c0_77], %103 {strides = array<i32>} : memref<2x8x16xf32, #tpu.memory_space<vmem>>, vector<2x8x16xf32>,
    } else {
    }
    %c0 = arith.constant 0 : index
    %c0_1 = arith.constant 0 : index
    %c0_2 = arith.constant 0 : index
    %3 = vector.load %arg4[%c0, %c0_1, %c0_2] : memref<1x8x32xbf16, #tpu.memory_space<vmem>>, vector<1x8x32xbf16>
    %4 = vector.shape_cast %3 : vector<1x8x32xbf16> to vector<8x32xbf16>
    %c0_3 = arith.constant 0 : index
    %c0_4 = arith.constant 0 : index
    %5 = vector.load %arg7[%c0_3, %c0_4] : memref<32x64xbf16, #tpu.memory_space<vmem>>, vector<32x64xbf16>
    %cst = arith.constant dense<0.000000e+00> : vector<8x64xf32>
    %6 = tpu.matmul %4, %5, %cst {dimension_numbers = #tpu.dot_dimension_numbers<[1], [0], [0], [1], [0, 0, 1, 1], [], []>} : vector<8x32xbf16>, vector<32x64xbf16>, vector<8x64xf32> -> vector<8x64xf32>
    %c0_5 = arith.constant 0 : index
    %c0_6 = arith.constant 0 : index
    %7 = vector.load %arg8[%c0_5, %c0_6] : memref<1x64xf32, #tpu.memory_space<vmem>>, vector<1x64xf32>
    %8 = vector.broadcast %7 : vector<1x64xf32> to vector<8x64xf32>
    %9 = arith.addf %6, %8 : vector<8x64xf32>
    %10 = arith.truncf %9 : vector<8x64xf32> to vector<8x64xbf16>
    %11 = vector.extract_strided_slice %10 {offsets = [0, 0], sizes = [8, 32], strides = [1, 1]} : vector<8x64xbf16> to vector<8x32xbf16>
    %12 = vector.extract_strided_slice %10 {offsets = [0, 32], sizes = [8, 32], strides = [1, 1]} : vector<8x64xbf16> to vector<8x32xbf16>
    %c0_7 = arith.constant 0 : index
    %c0_8 = arith.constant 0 : index
    %13 = vector.load %arg12[%c0_7, %c0_8] : memref<8x32xbf16, #tpu.memory_space<vmem>>, vector<8x16xbf16>
    %14 = vector.extract_strided_slice %11 {offsets = [0, 0], sizes = [8, 16], strides = [1, 1]} : vector<8x32xbf16> to vector<8x16xbf16>
    %15 = vector.extract_strided_slice %12 {offsets = [0, 0], sizes = [8, 16], strides = [1, 1]} : vector<8x32xbf16> to vector<8x16xbf16>
    %cst_9 = arith.constant dense<0.000000e+00> : vector<8x8xf32>
    %16 = tpu.matmul %13, %14, %cst_9 {dimension_numbers = #tpu.dot_dimension_numbers<[1], [1], [0], [0], [0, 0, 1, 0], [], []>} : vector<8x16xbf16>, vector<8x16xbf16>, vector<8x8xf32> -> vector<8x8xf32>
    %c0_10 = arith.constant 0 : index
    %c0_11 = arith.constant 0 : index
    %c0_12 = arith.constant 0 : index
    %17 = vector.load %arg13[%c0_10, %c0_11, %c0_12] : memref<2x8x1xf32, #tpu.memory_space<vmem>>, vector<1x8x1xf32>
    %18 = vector.shape_cast %17 : vector<1x8x1xf32> to vector<8x1xf32>
    %cst_13 = arith.constant dense<0xFF800000> : vector<8xf32>
    %19 = vector.multi_reduction <maximumf>, %16, %cst_13 [1] : vector<8x8xf32> to vector<8xf32>
    %20 = vector.shape_cast %19 : vector<8xf32> to vector<8x1xf32>
    %21 = arith.maximumf %18, %20 : vector<8x1xf32>
    %22 = arith.subf %18, %21 : vector<8x1xf32>
    %23 = math.exp %22 : vector<8x1xf32>
    %24 = vector.broadcast %21 : vector<8x1xf32> to vector<8x8xf32>
    %25 = arith.subf %16, %24 : vector<8x8xf32>
    %26 = math.exp %25 : vector<8x8xf32>
    %c0_14 = arith.constant 0 : index
    %c0_15 = arith.constant 0 : index
    %c0_16 = arith.constant 0 : index
    %27 = vector.load %arg14[%c0_14, %c0_15, %c0_16] : memref<2x8x1xf32, #tpu.memory_space<vmem>>, vector<1x8x1xf32>
    %28 = vector.shape_cast %27 : vector<1x8x1xf32> to vector<8x1xf32>
    %29 = arith.mulf %23, %28 : vector<8x1xf32>
    %cst_17 = arith.constant dense<0.000000e+00> : vector<8xf32>
    %30 = vector.multi_reduction <add>, %26, %cst_17 [1] : vector<8x8xf32> to vector<8xf32>
    %31 = vector.shape_cast %30 : vector<8xf32> to vector<8x1xf32>
    %32 = arith.addf %29, %31 : vector<8x1xf32>
    %c0_18 = arith.constant 0 : index
    %c0_19 = arith.constant 0 : index
    %c0_20 = arith.constant 0 : index
    %33 = vector.load %arg14[%c0_18, %c0_19, %c0_20] : memref<2x8x1xf32, #tpu.memory_space<vmem>>, vector<1x8x1xf32>
    %34 = vector.shape_cast %33 : vector<1x8x1xf32> to vector<8x1xf32>
    %35 = vector.shape_cast %32 : vector<8x1xf32> to vector<1x8x1xf32>
    tpu.vector_store %arg14[%c0_18, %c0_19, %c0_20], %35 {strides = array<i32>} : memref<2x8x1xf32, #tpu.memory_space<vmem>>, vector<1x8x1xf32>,
    %c0_21 = arith.constant 0 : index
    %c0_22 = arith.constant 0 : index
    %c0_23 = arith.constant 0 : index
    %36 = vector.load %arg15[%c0_21, %c0_22, %c0_23] : memref<2x8x16xf32, #tpu.memory_space<vmem>>, vector<1x8x16xf32>
    %37 = vector.shape_cast %36 : vector<1x8x16xf32> to vector<8x16xf32>
    %38 = vector.broadcast %23 : vector<8x1xf32> to vector<8x16xf32>
    %39 = arith.mulf %38, %37 : vector<8x16xf32>
    %40 = arith.truncf %26 : vector<8x8xf32> to vector<8x8xbf16>
    %cst_24 = arith.constant dense<0.000000e+00> : vector<8x16xf32>
    %41 = tpu.matmul %40, %15, %cst_24 {dimension_numbers = #tpu.dot_dimension_numbers<[1], [0], [0], [1], [0, 0, 1, 1], [], []>} : vector<8x8xbf16>, vector<8x16xbf16>, vector<8x16xf32> -> vector<8x16xf32>
    %42 = arith.addf %39, %41 : vector<8x16xf32>
    %c0_25 = arith.constant 0 : index
    %c0_26 = arith.constant 0 : index
    %c0_27 = arith.constant 0 : index
    %43 = vector.load %arg15[%c0_25, %c0_26, %c0_27] : memref<2x8x16xf32, #tpu.memory_space<vmem>>, vector<1x8x16xf32>
    %44 = vector.shape_cast %43 : vector<1x8x16xf32> to vector<8x16xf32>
    %45 = vector.shape_cast %42 : vector<8x16xf32> to vector<1x8x16xf32>
    tpu.vector_store %arg15[%c0_25, %c0_26, %c0_27], %45 {strides = array<i32>} : memref<2x8x16xf32, #tpu.memory_space<vmem>>, vector<1x8x16xf32>,
    %c0_28 = arith.constant 0 : index
    %c0_29 = arith.constant 0 : index
    %c0_30 = arith.constant 0 : index
    %46 = vector.load %arg13[%c0_28, %c0_29, %c0_30] : memref<2x8x1xf32, #tpu.memory_space<vmem>>, vector<1x8x1xf32>
    %47 = vector.shape_cast %46 : vector<1x8x1xf32> to vector<8x1xf32>
    %48 = vector.shape_cast %21 : vector<8x1xf32> to vector<1x8x1xf32>
    tpu.vector_store %arg13[%c0_28, %c0_29, %c0_30], %48 {strides = array<i32>} : memref<2x8x1xf32, #tpu.memory_space<vmem>>, vector<1x8x1xf32>,
    %c0_31 = arith.constant 0 : index
    %c16 = arith.constant 16 : index
    %49 = vector.load %arg12[%c0_31, %c16] : memref<8x32xbf16, #tpu.memory_space<vmem>>, vector<8x16xbf16>
    %50 = vector.extract_strided_slice %11 {offsets = [0, 16], sizes = [8, 16], strides = [1, 1]} : vector<8x32xbf16> to vector<8x16xbf16>
    %51 = vector.extract_strided_slice %12 {offsets = [0, 16], sizes = [8, 16], strides = [1, 1]} : vector<8x32xbf16> to vector<8x16xbf16>
    %cst_32 = arith.constant dense<0.000000e+00> : vector<8x8xf32>
    %52 = tpu.matmul %49, %50, %cst_32 {dimension_numbers = #tpu.dot_dimension_numbers<[1], [1], [0], [0], [0, 0, 1, 0], [], []>} : vector<8x16xbf16>, vector<8x16xbf16>, vector<8x8xf32> -> vector<8x8xf32>
    %c1 = arith.constant 1 : index
    %c0_33 = arith.constant 0 : index
    %c0_34 = arith.constant 0 : index
    %53 = vector.load %arg13[%c1, %c0_33, %c0_34] : memref<2x8x1xf32, #tpu.memory_space<vmem>>, vector<1x8x1xf32>
    %54 = vector.shape_cast %53 : vector<1x8x1xf32> to vector<8x1xf32>
    %cst_35 = arith.constant dense<0xFF800000> : vector<8xf32>
    %55 = vector.multi_reduction <maximumf>, %52, %cst_35 [1] : vector<8x8xf32> to vector<8xf32>
    %56 = vector.shape_cast %55 : vector<8xf32> to vector<8x1xf32>
    %57 = arith.maximumf %54, %56 : vector<8x1xf32>
    %58 = arith.subf %54, %57 : vector<8x1xf32>
    %59 = math.exp %58 : vector<8x1xf32>
    %60 = vector.broadcast %57 : vector<8x1xf32> to vector<8x8xf32>
    %61 = arith.subf %52, %60 : vector<8x8xf32>
    %62 = math.exp %61 : vector<8x8xf32>
    %c1_36 = arith.constant 1 : index
    %c0_37 = arith.constant 0 : index
    %c0_38 = arith.constant 0 : index
    %63 = vector.load %arg14[%c1_36, %c0_37, %c0_38] : memref<2x8x1xf32, #tpu.memory_space<vmem>>, vector<1x8x1xf32>
    %64 = vector.shape_cast %63 : vector<1x8x1xf32> to vector<8x1xf32>
    %65 = arith.mulf %59, %64 : vector<8x1xf32>
    %cst_39 = arith.constant dense<0.000000e+00> : vector<8xf32>
    %66 = vector.multi_reduction <add>, %62, %cst_39 [1] : vector<8x8xf32> to vector<8xf32>
    %67 = vector.shape_cast %66 : vector<8xf32> to vector<8x1xf32>
    %68 = arith.addf %65, %67 : vector<8x1xf32>
    %c1_40 = arith.constant 1 : index
    %c0_41 = arith.constant 0 : index
    %c0_42 = arith.constant 0 : index
    %69 = vector.load %arg14[%c1_40, %c0_41, %c0_42] : memref<2x8x1xf32, #tpu.memory_space<vmem>>, vector<1x8x1xf32>
    %70 = vector.shape_cast %69 : vector<1x8x1xf32> to vector<8x1xf32>
    %71 = vector.shape_cast %68 : vector<8x1xf32> to vector<1x8x1xf32>
    tpu.vector_store %arg14[%c1_40, %c0_41, %c0_42], %71 {strides = array<i32>} : memref<2x8x1xf32, #tpu.memory_space<vmem>>, vector<1x8x1xf32>,
    %c1_43 = arith.constant 1 : index
    %c0_44 = arith.constant 0 : index
    %c0_45 = arith.constant 0 : index
    %72 = vector.load %arg15[%c1_43, %c0_44, %c0_45] : memref<2x8x16xf32, #tpu.memory_space<vmem>>, vector<1x8x16xf32>
    %73 = vector.shape_cast %72 : vector<1x8x16xf32> to vector<8x16xf32>
    %74 = vector.broadcast %59 : vector<8x1xf32> to vector<8x16xf32>
    %75 = arith.mulf %74, %73 : vector<8x16xf32>
    %76 = arith.truncf %62 : vector<8x8xf32> to vector<8x8xbf16>
    %cst_46 = arith.constant dense<0.000000e+00> : vector<8x16xf32>
    %77 = tpu.matmul %76, %51, %cst_46 {dimension_numbers = #tpu.dot_dimension_numbers<[1], [0], [0], [1], [0, 0, 1, 1], [], []>} : vector<8x8xbf16>, vector<8x16xbf16>, vector<8x16xf32> -> vector<8x16xf32>
    %78 = arith.addf %75, %77 : vector<8x16xf32>
    %c1_47 = arith.constant 1 : index
    %c0_48 = arith.constant 0 : index
    %c0_49 = arith.constant 0 : index
    %79 = vector.load %arg15[%c1_47, %c0_48, %c0_49] : memref<2x8x16xf32, #tpu.memory_space<vmem>>, vector<1x8x16xf32>
    %80 = vector.shape_cast %79 : vector<1x8x16xf32> to vector<8x16xf32>
    %81 = vector.shape_cast %78 : vector<8x16xf32> to vector<1x8x16xf32>
    tpu.vector_store %arg15[%c1_47, %c0_48, %c0_49], %81 {strides = array<i32>} : memref<2x8x16xf32, #tpu.memory_space<vmem>>, vector<1x8x16xf32>,
    %c1_50 = arith.constant 1 : index
    %c0_51 = arith.constant 0 : index
    %c0_52 = arith.constant 0 : index
    %82 = vector.load %arg13[%c1_50, %c0_51, %c0_52] : memref<2x8x1xf32, #tpu.memory_space<vmem>>, vector<1x8x1xf32>
    %83 = vector.shape_cast %82 : vector<1x8x1xf32> to vector<8x1xf32>
    %84 = vector.shape_cast %57 : vector<8x1xf32> to vector<1x8x1xf32>
    tpu.vector_store %arg13[%c1_50, %c0_51, %c0_52], %84 {strides = array<i32>} : memref<2x8x1xf32, #tpu.memory_space<vmem>>, vector<1x8x1xf32>,
    %c0_i32_53 = arith.constant 0 : i32
    %85 = arith.cmpi eq, %arg2, %c0_i32_53 : i32
    %86 = arith.extui %85 : i1 to i32
    %c0_i32_54 = arith.constant 0 : i32
    %87 = arith.cmpi ne, %86, %c0_i32_54 : i32
    scf.if %87 {
      %cst_55 = arith.constant 0.000000e+00 : f32
      %88 = vector.broadcast %cst_55 : f32 to vector<8x32xf32>
      %c0_56 = arith.constant 0 : index
      %c0_57 = arith.constant 0 : index
      %c0_58 = arith.constant 0 : index
      %89 = vector.load %arg14[%c0_56, %c0_57, %c0_58] : memref<2x8x1xf32, #tpu.memory_space<vmem>>, vector<1x8x1xf32>
      %90 = vector.shape_cast %89 : vector<1x8x1xf32> to vector<8x1xf32>
      %91 = tpu.reciprocal %90 : vector<8x1xf32> -> vector<8x1xf32>
      %c0_59 = arith.constant 0 : index
      %c0_60 = arith.constant 0 : index
      %c0_61 = arith.constant 0 : index
      %92 = vector.load %arg15[%c0_59, %c0_60, %c0_61] : memref<2x8x16xf32, #tpu.memory_space<vmem>>, vector<1x8x16xf32>
      %93 = vector.shape_cast %92 : vector<1x8x16xf32> to vector<8x16xf32>
      %94 = vector.broadcast %91 : vector<8x1xf32> to vector<8x16xf32>
      %95 = arith.mulf %93, %94 : vector<8x16xf32>
      %96 = arith.truncf %95 : vector<8x16xf32> to vector<8x16xbf16>
      %c0_62 = arith.constant 0 : index
      %c0_63 = arith.constant 0 : index
      %c0_64 = arith.constant 0 : index
      %97 = vector.load %arg9[%c0_62, %c0_63, %c0_64] : memref<2x16x32xbf16, #tpu.memory_space<vmem>>, vector<1x16x32xbf16>
      %98 = vector.shape_cast %97 : vector<1x16x32xbf16> to vector<16x32xbf16>
      %cst_65 = arith.constant dense<0.000000e+00> : vector<8x32xf32>
      %99 = tpu.matmul %96, %98, %cst_65 {dimension_numbers = #tpu.dot_dimension_numbers<[1], [0], [0], [1], [0, 0, 1, 1], [], []>} : vector<8x16xbf16>, vector<16x32xbf16>, vector<8x32xf32> -> vector<8x32xf32>
      %100 = arith.addf %88, %99 : vector<8x32xf32>
      %c1_66 = arith.constant 1 : index
      %c0_67 = arith.constant 0 : index
      %c0_68 = arith.constant 0 : index
      %101 = vector.load %arg14[%c1_66, %c0_67, %c0_68] : memref<2x8x1xf32, #tpu.memory_space<vmem>>, vector<1x8x1xf32>
      %102 = vector.shape_cast %101 : vector<1x8x1xf32> to vector<8x1xf32>
      %103 = tpu.reciprocal %102 : vector<8x1xf32> -> vector<8x1xf32>
      %c1_69 = arith.constant 1 : index
      %c0_70 = arith.constant 0 : index
      %c0_71 = arith.constant 0 : index
      %104 = vector.load %arg15[%c1_69, %c0_70, %c0_71] : memref<2x8x16xf32, #tpu.memory_space<vmem>>, vector<1x8x16xf32>
      %105 = vector.shape_cast %104 : vector<1x8x16xf32> to vector<8x16xf32>
      %106 = vector.broadcast %103 : vector<8x1xf32> to vector<8x16xf32>
      %107 = arith.mulf %105, %106 : vector<8x16xf32>
      %108 = arith.truncf %107 : vector<8x16xf32> to vector<8x16xbf16>
      %c1_72 = arith.constant 1 : index
      %c0_73 = arith.constant 0 : index
      %c0_74 = arith.constant 0 : index
      %109 = vector.load %arg9[%c1_72, %c0_73, %c0_74] : memref<2x16x32xbf16, #tpu.memory_space<vmem>>, vector<1x16x32xbf16>
      %110 = vector.shape_cast %109 : vector<1x16x32xbf16> to vector<16x32xbf16>
      %cst_75 = arith.constant dense<0.000000e+00> : vector<8x32xf32>
      %111 = tpu.matmul %108, %110, %cst_75 {dimension_numbers = #tpu.dot_dimension_numbers<[1], [0], [0], [1], [0, 0, 1, 1], [], []>} : vector<8x16xbf16>, vector<16x32xbf16>, vector<8x32xf32> -> vector<8x32xf32>
      %112 = arith.addf %100, %111 : vector<8x32xf32>
      %c0_76 = arith.constant 0 : index
      %c0_77 = arith.constant 0 : index
      %113 = vector.load %arg10[%c0_76, %c0_77] : memref<1x32xf32, #tpu.memory_space<vmem>>, vector<1x32xf32>
      %114 = vector.broadcast %113 : vector<1x32xf32> to vector<8x32xf32>
      %115 = arith.addf %112, %114 : vector<8x32xf32>
      %c0_78 = arith.constant 0 : index
      %c0_79 = arith.constant 0 : index
      %c0_80 = arith.constant 0 : index
      %116 = vector.load %arg11[%c0_78, %c0_79, %c0_80] : memref<1x8x32xf32, #tpu.memory_space<vmem>>, vector<1x8x32xf32>
      %117 = vector.shape_cast %116 : vector<1x8x32xf32> to vector<8x32xf32>
      %118 = vector.shape_cast %115 : vector<8x32xf32> to vector<1x8x32xf32>
      tpu.vector_store %arg11[%c0_78, %c0_79, %c0_80], %118 {strides = array<i32>} : memref<1x8x32xf32, #tpu.memory_space<vmem>>, vector<1x8x32xf32>,
    } else {
    }
    return
  }
  func.func @transform_0(%arg0: i32, %arg1: i32, %arg2: i32) -> (i32, i32, i32) {
    %c0_i32 = arith.constant 0 : i32
    %c0_i32_0 = arith.constant 0 : i32
    return %arg0, %arg1, %c0_i32 : i32, i32, i32
  }
  func.func @transform_1(%arg0: i32, %arg1: i32, %arg2: i32) -> (i32, i32, i32) {
    %c0_i32 = arith.constant 0 : i32
    %c0_i32_0 = arith.constant 0 : i32
    return %arg0, %arg2, %c0_i32 : i32, i32, i32
  }
  func.func @transform_2(%arg0: i32, %arg1: i32, %arg2: i32) -> (i32, i32) {
    %c0_i32 = arith.constant 0 : i32
    %c0_i32_0 = arith.constant 0 : i32
    %c0_i32_1 = arith.constant 0 : i32
    return %c0_i32, %c0_i32_0 : i32, i32
  }
  func.func @transform_3(%arg0: i32, %arg1: i32, %arg2: i32) -> (i32, i32) {
    %c0_i32 = arith.constant 0 : i32
    %c0_i32_0 = arith.constant 0 : i32
    %c0_i32_1 = arith.constant 0 : i32
    return %c0_i32, %c0_i32_0 : i32, i32
  }
  func.func @transform_4(%arg0: i32, %arg1: i32, %arg2: i32) -> (i32, i32) {
    %c0_i32 = arith.constant 0 : i32
    %c0_i32_0 = arith.constant 0 : i32
    %c0_i32_1 = arith.constant 0 : i32
    return %c0_i32, %c0_i32_0 : i32, i32
  }
  func.func @transform_5(%arg0: i32, %arg1: i32, %arg2: i32) -> (i32, i32) {
    %c0_i32 = arith.constant 0 : i32
    %c0_i32_0 = arith.constant 0 : i32
    %c0_i32_1 = arith.constant 0 : i32
    return %c0_i32, %c0_i32_0 : i32, i32
  }
  func.func @transform_6(%arg0: i32, %arg1: i32, %arg2: i32) -> (i32, i32, i32) {
    %c0_i32 = arith.constant 0 : i32
    %c0_i32_0 = arith.constant 0 : i32
    %c0_i32_1 = arith.constant 0 : i32
    %c0_i32_2 = arith.constant 0 : i32
    return %c0_i32, %c0_i32_0, %c0_i32_1 : i32, i32, i32
  }
  func.func @transform_7(%arg0: i32, %arg1: i32, %arg2: i32) -> (i32, i32) {
    %c0_i32 = arith.constant 0 : i32
    %c0_i32_0 = arith.constant 0 : i32
    %c0_i32_1 = arith.constant 0 : i32
    return %c0_i32, %c0_i32_0 : i32, i32
  }
  func.func @transform_8(%arg0: i32, %arg1: i32, %arg2: i32) -> (i32, i32, i32) {
    %c0_i32 = arith.constant 0 : i32
    %c0_i32_0 = arith.constant 0 : i32
    return %arg0, %arg1, %c0_i32 : i32, i32, i32
  }
}

</mosaic_0001>

<llo_original>
// kernel: tpu_custom_call.1
$region0: #{tpu_custom_call.1}
  #allocation0 [shape = 'u32[]', space=smem, size = 0x4, offset = 0x4, fixed_abs, tag = 'smem constant byte address 0x4 - core index']
  #allocation1 [shape = 'u32[144,128]{1,0:T(1,128)}', space=vmem, size = 0x12000, scoped, tag = 'internal scratch']
  #allocation2 [shape = 'bf16[8,32]{1,0:T(8,128)(2,1)}', space=vmem, size = 0x800, scoped, tag = 'scratch operand']
  #allocation3 [shape = 'f32[2,8,1]{2,1,0:T(8,128)}', space=vmem, size = 0x2000, scoped, tag = 'scratch operand']
  #allocation4 [shape = 'f32[2,8,1]{2,1,0:T(8,128)}', space=vmem, size = 0x2000, scoped, tag = 'scratch operand']
  #allocation5 [shape = 'f32[2,8,16]{2,1,0:T(8,128)}', space=vmem, size = 0x2000, scoped, tag = 'scratch operand']
  %s0 = inlined_call_operand.hbm [shape: bf16[2,8,32], index: 0, kind: input, shape index: {}]
  %s1 = inlined_call_operand.hbm [shape: bf16[2,8,32], index: 1, kind: input, shape index: {}]
  %s2 = inlined_call_operand.hbm [shape: bf16[32,32], index: 2, kind: input, shape index: {}]
  %s3 = inlined_call_operand.vmem [shape: f32[1,32], index: 3, kind: input, shape index: {}]
  %s4 = inlined_call_operand.hbm [shape: bf16[32,64], index: 4, kind: input, shape index: {}]
  %s5 = inlined_call_operand.vmem [shape: f32[1,64], index: 5, kind: input, shape index: {}]
  %s6 = inlined_call_operand.hbm [shape: bf16[2,16,32], index: 6, kind: input, shape index: {}]
  %s7 = inlined_call_operand.vmem [shape: f32[1,32], index: 7, kind: input, shape index: {}]
  %s8 = inlined_call_operand.hbm [shape: f32[2,8,32], index: 8, kind: output, shape index: {}]
  %s9 = sld [smem:[#allocation0]]
  $region93: #{tpu_custom_call.1} parent=0
    _
  %s11 = ssub.s32 1, %s9
  %s12 = scalar_select 0, %s11, %s9
  $region1: #{tpu_custom_call.1} parent=0
    #allocation6 [shape = 'u8[4096]{0}', space=vmem, size = 0x1000, scoped, tag = 'input window, operand 0']
    #allocation7 [shape = 's32[2]{0}', space=sflag, size = 0x8, scoped, tag = 'scoped memory for tpu_custom_call.1']
    #allocation8 [shape = 's32[2]{0}', space=sflag, size = 0x8, scoped, tag = 'scoped memory for tpu_custom_call.1']
    #allocation9 [shape = 'u8[4096]{0}', space=vmem, size = 0x1000, scoped, tag = 'input window, operand 1']
    #allocation10 [shape = 's32[2]{0}', space=sflag, size = 0x8, scoped, tag = 'scoped memory for tpu_custom_call.1']
    #allocation11 [shape = 'u8[8192]{0}', space=vmem, size = 0x2000, scoped, tag = 'input window, operand 2, single buffered']
    #allocation12 [shape = 'u8[8192]{0}', space=vmem, size = 0x2000, scoped, tag = 'input window, operand 4, single buffered']
    #allocation13 [shape = 's32[1]{0}', space=sflag, size = 0x4, scoped, tag = 'scoped memory for tpu_custom_call.1']
    #allocation14 [shape = 'u8[8192]{0}', space=vmem, size = 0x2000, scoped, tag = 'input window, operand 6, single buffered']
    #allocation15 [shape = 'u8[8192]{0}', space=vmem, size = 0x2000, scoped, tag = 'output window, operand 0']
    %13 = vsyncpa [#allocation7], 0
    %s14 = scalar_lea.sflag [#allocation7], 1
    %15 = vsyncpa %s14, 0
    %16 = vsyncpa [#allocation10], 0
    %s17 = scalar_lea.sflag [#allocation10], 1
    %18 = vsyncpa %s17, 0
    %19 = vsyncpa [#allocation13], 0
    %20 = vsyncpa [#allocation8], 0
    %s21 = scalar_lea.sflag [#allocation8], 1
    %22 = vsyncpa %s21, 0
    loop: start=0, step=1, limit=4
    $region2: #{tpu_custom_call.1} parent=1 // loop_pre_header
      _
    $region3: #{tpu_custom_call.1} parent=1 // loop_header
      %s24 = sphi 0, %s28
      %p25 = scmp.ge.s32.totalorder %s24, 4
      %s31 = sphi 0, %s50
      %s32 = sphi 0, %s46
      %s33 = sphi 0, %s42
      %s34 = sphi 0, %s31
      %s35 = sphi 0, %s32
      %s36 = sphi 0, %s33
      %s37 = sphi 0, %s34
      %s38 = sphi 0, %s35
      %s39 = sphi 0, %s36
      %s55 = sphi 0, %s57
      %s58 = sphi 0, %s55
      %s59 = sphi 0, %s58
      %s75 = sphi 0, %s59
      %s83 = sphi 0, %s85
      %s86 = sphi 0, %s83
      %s87 = sphi 0, %s86
      %s103 = sphi 0, %s87
      %s107 = sphi 0, %s107
      %s109 = sphi 0, %s107
      %s110 = sphi 0, %s109
      %s124 = sphi 0, %s110
      %s128 = sphi 0, %s128
      %s130 = sphi 0, %s128
      %s131 = sphi 0, %s130
      %s145 = sphi 0, %s131
      %s149 = sphi 0, %s149
      %s151 = sphi 0, %s149
      %s152 = sphi 0, %s151
      %s166 = sphi 0, %s152
      %s170 = sphi 0, %s170
      %s172 = sphi 0, %s170
      %s173 = sphi 0, %s172
      %s187 = sphi 0, %s173
      %s191 = sphi 0, %s191
      %s193 = sphi 0, %s191
      %s194 = sphi 0, %s193
      %s208 = sphi 0, %s194
      %s212 = sphi 0, %s212
      %s214 = sphi 0, %s212
      %s215 = sphi 0, %s214
      %s229 = sphi 0, %s215
      %s237 = sphi 0, %s239
      %s240 = sphi 0, %s237
      %s241 = sphi 0, %s240
      %s257 = sphi 0, %s241
    $region4: #{tpu_custom_call.1} parent=1 // loop_header_branch
      %27 = sbr.rel (%p25) target = $region8
    $region5: #{tpu_custom_call.1} parent=1 // loop_body
      %s29 = ssub.s32 %s24, 1
      %s30 = ssub.s32 %s24, 2
      %s40 = sadd.s32 1, %s33
      %p41 = scmp.ge.s32.totalorder %s40, 1
      %s42 = scalar_select %p41, 0, %s40
      %s43 = sadd.s32 1, %s32
      %s44 = scalar_select %p41, %s43, %s32
      %p45 = scmp.ge.s32.totalorder %s44, 1
      %s46 = scalar_select %p45, 0, %s44
      %s47 = sadd.s32 1, %s31
      %s48 = scalar_select %p45, %s47, %s31
      %p49 = scmp.ge.s32.totalorder %s48, 2
      %s50 = scalar_select %p49, 0, %s48
      %s51 = ssub.s32 %s31, %s50
      %s52 = ssub.s32 %s32, %s46
      %s53 = sor.u32 %s51, %s52
      %p54 = scmp.eq.s32.totalorder %s53, 0
      %s56 = sadd.s32 %s55, 1
      %s57 = scalar_select %p54, %s55, %s56
      %p60 = pneg %p54
      %p61 = scmp.eq.s32.totalorder %s24, 1
      %p62 = por %p60, %p61
      %p63 = scmp.ne.s32.totalorder %s55, %s58
      %p64 = scmp.eq.s32.totalorder %s24, 0
      %p65 = por %p63, %p64
      %p66 = scmp.ne.s32.totalorder %s55, %s58
      %p67 = scmp.eq.s32.totalorder %s29, 1
      %p68 = por %p66, %p67
      %p69 = scmp.ne.s32.totalorder %s58, %s59
      %p70 = scmp.eq.s32.totalorder %s29, 0
      %p71 = por %p69, %p70
      %p72 = scmp.ne.s32.totalorder %s58, %s59
      %p73 = scmp.eq.s32.totalorder %s30, 1
      %p74 = por %p72, %p73
      %p76 = scmp.ne.s32.totalorder %s59, %s75
      %p77 = scmp.eq.s32.totalorder %s30, 0
      %p78 = por %p76, %p77
      %s79 = ssub.s32 %s31, %s50
      %s80 = ssub.s32 %s33, %s42
      %s81 = sor.u32 %s79, %s80
      %p82 = scmp.eq.s32.totalorder %s81, 0
      %s84 = sadd.s32 %s83, 1
      %s85 = scalar_select %p82, %s83, %s84
      %p88 = pneg %p82
      %p89 = scmp.eq.s32.totalorder %s24, 1
      %p90 = por %p88, %p89
      %p91 = scmp.ne.s32.totalorder %s83, %s86
      %p92 = scmp.eq.s32.totalorder %s24, 0
      %p93 = por %p91, %p92
      %p94 = scmp.ne.s32.totalorder %s83, %s86
      %p95 = scmp.eq.s32.totalorder %s29, 1
      %p96 = por %p94, %p95
      %p97 = scmp.ne.s32.totalorder %s86, %s87
      %p98 = scmp.eq.s32.totalorder %s29, 0
      %p99 = por %p97, %p98
      %p100 = scmp.ne.s32.totalorder %s86, %s87
      %p101 = scmp.eq.s32.totalorder %s30, 1
      %p102 = por %p100, %p101
      %p104 = scmp.ne.s32.totalorder %s87, %s103
      %p105 = scmp.eq.s32.totalorder %s30, 0
      %p106 = por %p104, %p105
      %s108 = sadd.s32 %s107, 1
      %p111 = scmp.eq.s32.totalorder %s24, 1
      %p112 = scmp.ne.s32.totalorder %s107, %s109
      %p113 = scmp.eq.s32.totalorder %s24, 0
      %p114 = por %p112, %p113
      %p115 = scmp.ne.s32.totalorder %s107, %s109
      %p116 = scmp.eq.s32.totalorder %s29, 1
      %p117 = por %p115, %p116
      %p118 = scmp.ne.s32.totalorder %s109, %s110
      %p119 = scmp.eq.s32.totalorder %s29, 0
      %p120 = por %p118, %p119
      %p121 = scmp.ne.s32.totalorder %s109, %s110
      %p122 = scmp.eq.s32.totalorder %s30, 1
      %p123 = por %p121, %p122
      %p125 = scmp.ne.s32.totalorder %s110, %s124
      %p126 = scmp.eq.s32.totalorder %s30, 0
      %p127 = por %p125, %p126
      %s129 = sadd.s32 %s128, 1
      %p132 = scmp.eq.s32.totalorder %s24, 1
      %p133 = scmp.ne.s32.totalorder %s128, %s130
      %p134 = scmp.eq.s32.totalorder %s24, 0
      %p135 = por %p133, %p134
      %p136 = scmp.ne.s32.totalorder %s128, %s130
      %p137 = scmp.eq.s32.totalorder %s29, 1
      %p138 = por %p136, %p137
      %p139 = scmp.ne.s32.totalorder %s130, %s131
      %p140 = scmp.eq.s32.totalorder %s29, 0
      %p141 = por %p139, %p140
      %p142 = scmp.ne.s32.totalorder %s130, %s131
      %p143 = scmp.eq.s32.totalorder %s30, 1
      %p144 = por %p142, %p143
      %p146 = scmp.ne.s32.totalorder %s131, %s145
      %p147 = scmp.eq.s32.totalorder %s30, 0
      %p148 = por %p146, %p147
      %s150 = sadd.s32 %s149, 1
      %p153 = scmp.eq.s32.totalorder %s24, 1
      %p154 = scmp.ne.s32.totalorder %s149, %s151
      %p155 = scmp.eq.s32.totalorder %s24, 0
      %p156 = por %p154, %p155
      %p157 = scmp.ne.s32.totalorder %s149, %s151
      %p158 = scmp.eq.s32.totalorder %s29, 1
      %p159 = por %p157, %p158
      %p160 = scmp.ne.s32.totalorder %s151, %s152
      %p161 = scmp.eq.s32.totalorder %s29, 0
      %p162 = por %p160, %p161
      %p163 = scmp.ne.s32.totalorder %s151, %s152
      %p164 = scmp.eq.s32.totalorder %s30, 1
      %p165 = por %p163, %p164
      %p167 = scmp.ne.s32.totalorder %s152, %s166
      %p168 = scmp.eq.s32.totalorder %s30, 0
      %p169 = por %p167, %p168
      %s171 = sadd.s32 %s170, 1
      %p174 = scmp.eq.s32.totalorder %s24, 1
      %p175 = scmp.ne.s32.totalorder %s170, %s172
      %p176 = scmp.eq.s32.totalorder %s24, 0
      %p177 = por %p175, %p176
      %p178 = scmp.ne.s32.totalorder %s170, %s172
      %p179 = scmp.eq.s32.totalorder %s29, 1
      %p180 = por %p178, %p179
      %p181 = scmp.ne.s32.totalorder %s172, %s173
      %p182 = scmp.eq.s32.totalorder %s29, 0
      %p183 = por %p181, %p182
      %p184 = scmp.ne.s32.totalorder %s172, %s173
      %p185 = scmp.eq.s32.totalorder %s30, 1
      %p186 = por %p184, %p185
      %p188 = scmp.ne.s32.totalorder %s173, %s187
      %p189 = scmp.eq.s32.totalorder %s30, 0
      %p190 = por %p188, %p189
      %s192 = sadd.s32 %s191, 1
      %p195 = scmp.eq.s32.totalorder %s24, 1
      %p196 = scmp.ne.s32.totalorder %s191, %s193
      %p197 = scmp.eq.s32.totalorder %s24, 0
      %p198 = por %p196, %p197
      %p199 = scmp.ne.s32.totalorder %s191, %s193
      %p200 = scmp.eq.s32.totalorder %s29, 1
      %p201 = por %p199, %p200
      %p202 = scmp.ne.s32.totalorder %s193, %s194
      %p203 = scmp.eq.s32.totalorder %s29, 0
      %p204 = por %p202, %p203
      %p205 = scmp.ne.s32.totalorder %s193, %s194
      %p206 = scmp.eq.s32.totalorder %s30, 1
      %p207 = por %p205, %p206
      %p209 = scmp.ne.s32.totalorder %s194, %s208
      %p210 = scmp.eq.s32.totalorder %s30, 0
      %p211 = por %p209, %p210
      %s213 = sadd.s32 %s212, 1
      %p216 = scmp.eq.s32.totalorder %s24, 1
      %p217 = scmp.ne.s32.totalorder %s212, %s214
      %p218 = scmp.eq.s32.totalorder %s24, 0
      %p219 = por %p217, %p218
      %p220 = scmp.ne.s32.totalorder %s212, %s214
      %p221 = scmp.eq.s32.totalorder %s29, 1
      %p222 = por %p220, %p221
      %p223 = scmp.ne.s32.totalorder %s214, %s215
      %p224 = scmp.eq.s32.totalorder %s29, 0
      %p225 = por %p223, %p224
      %p226 = scmp.ne.s32.totalorder %s214, %s215
      %p227 = scmp.eq.s32.totalorder %s30, 1
      %p228 = por %p226, %p227
      %p230 = scmp.ne.s32.totalorder %s215, %s229
      %p231 = scmp.eq.s32.totalorder %s30, 0
      %p232 = por %p230, %p231
      %s233 = ssub.s32 %s31, %s50
      %s234 = ssub.s32 %s32, %s46
      %s235 = sor.u32 %s233, %s234
      %p236 = scmp.eq.s32.totalorder %s235, 0
      %s238 = sadd.s32 %s237, 1
      %s239 = scalar_select %p236, %s237, %s238
      %p242 = pneg %p236
      %p243 = scmp.eq.s32.totalorder %s24, 1
      %p244 = por %p242, %p243
      %p245 = scmp.ne.s32.totalorder %s237, %s240
      %p246 = scmp.eq.s32.totalorder %s24, 0
      %p247 = por %p245, %p246
      %p248 = scmp.ne.s32.totalorder %s237, %s240
      %p249 = scmp.eq.s32.totalorder %s29, 1
      %p250 = por %p248, %p249
      %p251 = scmp.ne.s32.totalorder %s240, %s241
      %p252 = scmp.eq.s32.totalorder %s29, 0
      %p253 = por %p251, %p252
      %p254 = scmp.ne.s32.totalorder %s240, %s241
      %p255 = scmp.eq.s32.totalorder %s30, 1
      %p256 = por %p254, %p255
      %p258 = scmp.ne.s32.totalorder %s241, %s257
      %p259 = scmp.eq.s32.totalorder %s30, 0
      %p260 = por %p258, %p259
      %p261 = scmp.le.s32.totalorder 1, %s24
      %p262 = scmp.lt.s32.totalorder %s24, 3
      %p263 = pnand %p261, %p262
      %p264 = pneg %p263
      // Predicated region
      $region9: #{tpu_custom_call.1} parent=5 // pred_check
        _
      $region10: #{tpu_custom_call.1} parent=5 // pred_check_branch
        %266 = sbr.rel (%p263) target = $region12
      $region11: #{tpu_custom_call.1} parent=5 // pred_region
        %s267 = ssub.s32 %s24, 1
        // Predicated region
        $region13: #{tpu_custom_call.1} parent=11 // pred_check
          %p268 = pneg %p120
        $region14: #{tpu_custom_call.1} parent=11 // pred_check_branch
          %270 = sbr.rel (%p268) target = $region16
        $region15: #{tpu_custom_call.1} parent=11 // pred_region
          %s272 = ssub.s32 256, 256
          %273 = vsyncadd [#allocation10], %s272
          %s274 = sshll.u32 [#allocation11], 4
          %s275 = int_to_ptr.vmem [resolvable:$true] %s274
          %280 = dma.hbm_to_vmem [thread:$0]  %s2, 256, %s275, [#allocation10], 64, 64, 4
        $region16: #{tpu_custom_call.1} parent=11 // pred_fallthru
          _
        // Predicated region
        $region17: #{tpu_custom_call.1} parent=11 // pred_check
          %p281 = pneg %p141
        $region18: #{tpu_custom_call.1} parent=11 // pred_check_branch
          %283 = sbr.rel (%p281) target = $region20
        $region19: #{tpu_custom_call.1} parent=11 // pred_region
          _
        $region20: #{tpu_custom_call.1} parent=11 // pred_fallthru
          _
        // Predicated region
        $region21: #{tpu_custom_call.1} parent=11 // pred_check
          %p284 = pneg %p162
        $region22: #{tpu_custom_call.1} parent=11 // pred_check_branch
          %286 = sbr.rel (%p284) target = $region24
        $region23: #{tpu_custom_call.1} parent=11 // pred_region
          %s288 = ssub.s32 256, 256
          %289 = vsyncadd [#allocation13], %s288
          %s290 = sshll.u32 [#allocation12], 4
          %s291 = int_to_ptr.vmem [resolvable:$true] %s290
          %296 = dma.hbm_to_vmem [thread:$0]  %s4, 256, %s291, [#allocation13], 64, 64, 4
        $region24: #{tpu_custom_call.1} parent=11 // pred_fallthru
          _
        // Predicated region
        $region25: #{tpu_custom_call.1} parent=11 // pred_check
          %p297 = pneg %p183
        $region26: #{tpu_custom_call.1} parent=11 // pred_check_branch
          %299 = sbr.rel (%p297) target = $region28
        $region27: #{tpu_custom_call.1} parent=11 // pred_region
          _
        $region28: #{tpu_custom_call.1} parent=11 // pred_fallthru
          _
        // Predicated region
        $region29: #{tpu_custom_call.1} parent=11 // pred_check
          %p300 = pneg %p204
        $region30: #{tpu_custom_call.1} parent=11 // pred_check_branch
          %302 = sbr.rel (%p300) target = $region32
        $region31: #{tpu_custom_call.1} parent=11 // pred_region
          %s304 = ssub.s32 256, 256
          %305 = vsyncadd [#allocation13], %s304
          %s306 = sshll.u32 [#allocation14], 4
          %s307 = int_to_ptr.vmem [resolvable:$true] %s306
          %312 = dma.hbm_to_vmem [thread:$0]  %s6, 256, %s307, [#allocation13], 64, 64, 4
        $region32: #{tpu_custom_call.1} parent=11 // pred_fallthru
          _
        // Predicated region
        $region33: #{tpu_custom_call.1} parent=11 // pred_check
          %p313 = pneg %p225
        $region34: #{tpu_custom_call.1} parent=11 // pred_check_branch
          %315 = sbr.rel (%p313) target = $region36
        $region35: #{tpu_custom_call.1} parent=11 // pred_region
          _
        $region36: #{tpu_custom_call.1} parent=11 // pred_fallthru
          _
      $region12: #{tpu_custom_call.1} parent=5 // pred_fallthru
        _
      %p316 = scmp.lt.s32.totalorder %s24, 2
      // Predicated region
      $region37: #{tpu_custom_call.1} parent=5 // pred_check
        %p317 = pneg %p316
      $region38: #{tpu_custom_call.1} parent=5 // pred_check_branch
        %319 = sbr.rel (%p317) target = $region40
      $region39: #{tpu_custom_call.1} parent=5 // pred_region
        // Predicated region
        $region41: #{tpu_custom_call.1} parent=39 // pred_check
          %p320 = pneg %p65
        $region42: #{tpu_custom_call.1} parent=39 // pred_check_branch
          %322 = sbr.rel (%p320) target = $region44
        $region43: #{tpu_custom_call.1} parent=39 // pred_region
          %s323 = sand.u32 %s55, 1
          %s324 = scalar_lea.sflag [#allocation7], %s323
          %s325 = sand.u32 %s55, 1
          %s326 = smul.addr %s325, 4
          %s327 = scalar_lea.vmem [#allocation6], %s326
          %s329 = ssub.s32 64, 64
          %330 = vsyncadd %s324, %s329
          %s331 = sadd.s32 %s32, %s31
          %s332 = smul.addr %s331, 64
          %s333 = scalar_lea.hbm %s0, %s332
          %s335 = sshll.u32 %s327, 4
          %s336 = int_to_ptr.vmem [resolvable:$true] %s335
          %338 = dma.hbm_to_vmem [thread:$0]  %s333, 64, %s336, %s324
        $region44: #{tpu_custom_call.1} parent=39 // pred_fallthru
          _
        // Predicated region
        $region45: #{tpu_custom_call.1} parent=39 // pred_check
          %p339 = pneg %p93
        $region46: #{tpu_custom_call.1} parent=39 // pred_check_branch
          %341 = sbr.rel (%p339) target = $region48
        $region47: #{tpu_custom_call.1} parent=39 // pred_region
          %s342 = sand.u32 %s24, 1
          %s343 = scalar_lea.sflag [#allocation10], %s342
          %s344 = sand.u32 %s83, 1
          %s345 = smul.addr %s344, 4
          %s346 = scalar_lea.vmem [#allocation9], %s345
          %s348 = ssub.s32 64, 64
          %349 = vsyncadd %s343, %s348
          %s350 = sadd.s32 %s33, %s31
          %s351 = smul.addr %s350, 64
          %s352 = scalar_lea.hbm %s1, %s351
          %s354 = sshll.u32 %s346, 4
          %s355 = int_to_ptr.vmem [resolvable:$true] %s354
          %357 = dma.hbm_to_vmem [thread:$0]  %s352, 64, %s355, %s343
        $region48: #{tpu_custom_call.1} parent=39 // pred_fallthru
          _
      $region40: #{tpu_custom_call.1} parent=5 // pred_fallthru
        _
      %p358 = scmp.le.s32.totalorder 1, %s24
      %p359 = scmp.lt.s32.totalorder %s24, 3
      %p360 = pnand %p358, %p359
      %p361 = pneg %p360
      // Predicated region
      $region49: #{tpu_custom_call.1} parent=5 // pred_check
        _
      $region50: #{tpu_custom_call.1} parent=5 // pred_check_branch
        %363 = sbr.rel (%p360) target = $region52
      $region51: #{tpu_custom_call.1} parent=5 // pred_region
        %s364 = ssub.s32 %s24, 1
        %s365 = sand.u32 %s58, 1
        %s366 = scalar_lea.sflag [#allocation7], %s365
        %s367 = sand.u32 %s58, 1
        %s368 = smul.addr %s367, 4
        %s369 = scalar_lea.vmem [#allocation6], %s368
        // Predicated region
        $region53: #{tpu_custom_call.1} parent=51 // pred_check
          %p370 = pneg %p71
        $region54: #{tpu_custom_call.1} parent=51 // pred_check_branch
          %372 = sbr.rel (%p370) target = $region56
        $region55: #{tpu_custom_call.1} parent=51 // pred_region
          %373 = dma.done %s366, 64
        $region56: #{tpu_custom_call.1} parent=51 // pred_fallthru
          _
        %s374 = sand.u32 %s29, 1
        %s375 = scalar_lea.sflag [#allocation10], %s374
        %s376 = sand.u32 %s86, 1
        %s377 = smul.addr %s376, 4
        %s378 = scalar_lea.vmem [#allocation9], %s377
        // Predicated region
        $region57: #{tpu_custom_call.1} parent=51 // pred_check
          %p379 = pneg %p99
        $region58: #{tpu_custom_call.1} parent=51 // pred_check_branch
          %381 = sbr.rel (%p379) target = $region60
        $region59: #{tpu_custom_call.1} parent=51 // pred_region
          %382 = dma.done %s375, 64
        $region60: #{tpu_custom_call.1} parent=51 // pred_fallthru
          _
        // Predicated region
        $region61: #{tpu_custom_call.1} parent=51 // pred_check
          %p383 = pneg %p120
        $region62: #{tpu_custom_call.1} parent=51 // pred_check_branch
          %385 = sbr.rel (%p383) target = $region64
        $region63: #{tpu_custom_call.1} parent=51 // pred_region
          %386 = dma.done [#allocation10], 256
        $region64: #{tpu_custom_call.1} parent=51 // pred_fallthru
          _
        // Predicated region
        $region65: #{tpu_custom_call.1} parent=51 // pred_check
          %p387 = pneg %p162
        $region66: #{tpu_custom_call.1} parent=51 // pred_check_branch
          %389 = sbr.rel (%p387) target = $region68
        $region67: #{tpu_custom_call.1} parent=51 // pred_region
          %390 = dma.done [#allocation13], 256
        $region68: #{tpu_custom_call.1} parent=51 // pred_fallthru
          _
        // Predicated region
        $region69: #{tpu_custom_call.1} parent=51 // pred_check
          %p391 = pneg %p204
        $region70: #{tpu_custom_call.1} parent=51 // pred_check_branch
          %393 = sbr.rel (%p391) target = $region72
        $region71: #{tpu_custom_call.1} parent=51 // pred_region
          %394 = dma.done [#allocation13], 256
        $region72: #{tpu_custom_call.1} parent=51 // pred_fallthru
          _
        %s395 = sand.u32 %s58, 1
        %s396 = scalar_lea.sflag [#allocation7], %s395
        %s397 = sand.u32 %s58, 1
        %s398 = smul.addr %s397, 4
        %s399 = scalar_lea.vmem [#allocation6], %s398
        %p400 = pneg %p71
        %p401 = pneg %p68
        %s402 = sand.u32 %s29, 1
        %s403 = scalar_lea.sflag [#allocation10], %s402
        %s404 = sand.u32 %s86, 1
        %s405 = smul.addr %s404, 4
        %s406 = scalar_lea.vmem [#allocation9], %s405
        %p407 = pneg %p99
        %p408 = pneg %p96
        %p409 = pneg %p120
        %p410 = pneg %p117
        %p411 = pneg %p141
        %p412 = pneg %p138
        %p413 = pneg %p162
        %p414 = pneg %p159
        %p415 = pneg %p183
        %p416 = pneg %p180
        %p417 = pneg %p204
        %p418 = pneg %p201
        %p419 = pneg %p225
        %p420 = pneg %p222
        %p421 = pneg %p253
        %p422 = pneg %p250
        %s423 = sand.u32 %s240, 1
        %s424 = scalar_lea.sflag [#allocation8], %s423
        %s425 = sand.u32 %s240, 1
        %s426 = smul.addr %s425, 8
        %s427 = scalar_lea.vmem [#allocation15], %s426
        %p429 = scmp.eq.s32.totalorder %s36, 0
        // Predicated region
        $region73: #{tpu_custom_call.1} parent=51 // pred_check
          %p430 = pneg %p429
        $region74: #{tpu_custom_call.1} parent=51 // pred_check_branch
          %432 = sbr.rel (%p430) target = $region76
        $region75: #{tpu_custom_call.1} parent=51 // pred_region
          %v433 = vld [vmem:[%s369] sm:$0xf]
          %v434 = vld [vmem:[#allocation11] sm:$0xf]
          %v435 = vld [vmem:[#allocation11 + $0x4] sm:$0xf]
          %v436 = vld [vmem:[#allocation11 + $0x8] sm:$0xf]
          %v437 = vld [vmem:[#allocation11 + $0xc] sm:$0xf]
          %v438 = vld [vmem:[%s3] sm:$0x1]
          %v440 = vlaneseq
          %v441 = vshrl.u32 %v440, 7
          %v442 = vsub.s32 0, %v441
          %v443 = vrot.slane %v438, %v442
          %v449 = vunpack.c.l.b16 %v434
          %v450 = vunpack.c.l.b16 %v435
          %v451 = vunpack.c.l.b16 %v436
          %v452 = vunpack.c.l.b16 %v437
          %v453 = vpack.c.b16 %v450, %v449
          %v454 = vpack.c.b16 %v452, %v451
          %vm457 = vcmask 261120
          %v459 = vsel %vm457, %v433, 0
          %461 = vmatprep.subr.bf16.mxu0 0
          %462 = vmatpush1.bf16.msra.mxu0 0
          %463 = vmatprep.subr.bf16.mxu0 0
          %464 = vmatpush1.bf16.msra.mxu0 0
          %465 = vmatprep.subr.bf16.mxu0 0
          %466 = vmatpush1.bf16.msra.mxu0 0
          %467 = vmatprep.subr.bf16.mxu0 0
          %468 = vmatpush1.bf16.msra.mxu0 0
          %469 = vmatprep.subr.bf16.mxu0 0
          %470 = vmatpush1.bf16.msra.mxu0 0
          %471 = vmatprep.subr.bf16.mxu0 0
          %472 = vmatpush1.bf16.msra.mxu0 0
          %473 = vmatprep.subr.bf16.mxu0 0
          %474 = vmatpush1.bf16.msra.mxu0 %v454
          %475 = vmatprep.subr.bf16.mxu0 0
          %476 = vmatpush1.bf16.msra.mxu0 %v453
          %477 = vmatprep.subr.bf16.mxu0 0
          %478 = vmatpush2.bf16.msra.mxu0 0
          %479 = vmatprep.subr.bf16.mxu0 0
          %480 = vmatpush2.bf16.msra.mxu0 0
          %481 = vmatprep.subr.bf16.mxu0 0
          %482 = vmatpush2.bf16.msra.mxu0 0
          %483 = vmatprep.subr.bf16.mxu0 0
          %484 = vmatpush2.bf16.msra.mxu0 0
          %485 = vmatprep.subr.bf16.mxu0 0
          %486 = vmatpush2.bf16.msra.mxu0 0
          %487 = vmatprep.subr.bf16.mxu0 0
          %488 = vmatpush2.bf16.msra.mxu0 0
          %489 = vmatprep.subr.bf16.mxu0 0
          %490 = vmatpush2.bf16.msra.mxu0 0
          %491 = vmatprep.subr.bf16.mxu0 0
          %492 = vmatpush2.bf16.msra.mxu0 0
          %493 = vmatprep.mubr.bf16.mxu0 0
          %494 = vmatmul.mubr.bf16.gmra.mxu0 %v459
          %v495 = vpop.f32.mrf.mxu0
          %v496 = vadd.f32 %v443, %v495
          %v497 = vpop.f32.mrf.mxu0
          %v498 = vpop.f32.mrf.mxu0
          %v499 = vpop.f32.mrf.mxu0
          %500 = vdwg.mxu0
          %v501 = vmul.f32 %v496, 0.25
          %v502 = vpack.c.bf16 %v501, %v501
          %vm503 = vcmask 257024
          %504 = vst.msk [vmem:[#allocation2] sm:$0xf] %vm503, %v502
          %vm505 = vcmask 7168
          %506 = vst.msk [vmem:[#allocation3] sm:$0xff] %vm505, -inf
          %507 = vst.msk [vmem:[#allocation3 + $0x8] sm:$0xff] %vm505, -inf
          %508 = vst.msk [vmem:[#allocation4] sm:$0xff] %vm505, 0.0
          %509 = vst.msk [vmem:[#allocation4 + $0x8] sm:$0xff] %vm505, 0.0
          %vm510 = vcmask 130048
          %511 = vst.msk [vmem:[#allocation5] sm:$0xff] %vm510, 0.0
          %512 = vst.msk [vmem:[#allocation5 + $0x8] sm:$0xff] %vm510, 0.0
        $region76: #{tpu_custom_call.1} parent=51 // pred_fallthru
          _
        %v513 = vld [vmem:[%s378] sm:$0xf]
        %v514 = vld [vmem:[#allocation12] sm:$0xf]
        %v515 = vld [vmem:[#allocation12 + $0x4] sm:$0xf]
        %v516 = vld [vmem:[#allocation12 + $0x8] sm:$0xf]
        %v517 = vld [vmem:[#allocation12 + $0xc] sm:$0xf]
        %v518 = vld [vmem:[%s5] sm:$0x1]
        %v520 = vlaneseq
        %v521 = vshrl.u32 %v520, 7
        %v522 = vsub.s32 0, %v521
        %v523 = vrot.slane %v518, %v522
        %v529 = vunpack.c.l.b16 %v514
        %v530 = vunpack.c.l.b16 %v515
        %v531 = vunpack.c.l.b16 %v516
        %v532 = vunpack.c.l.b16 %v517
        %v533 = vpack.c.b16 %v530, %v529
        %v534 = vpack.c.b16 %v532, %v531
        %vm537 = vcmask 261120
        %v539 = vsel %vm537, %v513, 0
        %541 = vmatprep.subr.bf16.mxu0 0
        %542 = vmatpush1.bf16.msra.mxu0 0
        %543 = vmatprep.subr.bf16.mxu0 0
        %544 = vmatpush1.bf16.msra.mxu0 0
        %545 = vmatprep.subr.bf16.mxu0 0
        %546 = vmatpush1.bf16.msra.mxu0 0
        %547 = vmatprep.subr.bf16.mxu0 0
        %548 = vmatpush1.bf16.msra.mxu0 0
        %549 = vmatprep.subr.bf16.mxu0 0
        %550 = vmatpush1.bf16.msra.mxu0 0
        %551 = vmatprep.subr.bf16.mxu0 0
        %552 = vmatpush1.bf16.msra.mxu0 0
        %553 = vmatprep.subr.bf16.mxu0 0
        %554 = vmatpush1.bf16.msra.mxu0 %v534
        %555 = vmatprep.subr.bf16.mxu0 0
        %556 = vmatpush1.bf16.msra.mxu0 %v533
        %557 = vmatprep.subr.bf16.mxu0 0
        %558 = vmatpush2.bf16.msra.mxu0 0
        %559 = vmatprep.subr.bf16.mxu0 0
        %560 = vmatpush2.bf16.msra.mxu0 0
        %561 = vmatprep.subr.bf16.mxu0 0
        %562 = vmatpush2.bf16.msra.mxu0 0
        %563 = vmatprep.subr.bf16.mxu0 0
        %564 = vmatpush2.bf16.msra.mxu0 0
        %565 = vmatprep.subr.bf16.mxu0 0
        %566 = vmatpush2.bf16.msra.mxu0 0
        %567 = vmatprep.subr.bf16.mxu0 0
        %568 = vmatpush2.bf16.msra.mxu0 0
        %569 = vmatprep.subr.bf16.mxu0 0
        %570 = vmatpush2.bf16.msra.mxu0 0
        %571 = vmatprep.subr.bf16.mxu0 0
        %572 = vmatpush2.bf16.msra.mxu0 0
        %573 = vmatprep.mubr.bf16.mxu0 0
        %574 = vmatmul.mubr.bf16.gmra.mxu0 %v539
        %v575 = vpop.f32.mrf.mxu0
        %v576 = vadd.f32 %v523, %v575
        %v577 = vpop.f32.mrf.mxu0
        %v578 = vpop.f32.mrf.mxu0
        %v579 = vpop.f32.mrf.mxu0
        %580 = vdwg.mxu0
        %v581 = vpack.c.bf16 %v576, %v576
        %v582 = vld [vmem:[#allocation2] sm:$0xf]
        %vm583 = vcmask 130048
        %v585 = vsel %vm583, %v582, 0
        %v588 = vsel %vm583, %v581, 0
        %590 = vmatprep.subr.bf16.mxu0 0
        %591 = vmatpush1.bf16.xpose.msra.mxu0 0
        %592 = vmatprep.subr.bf16.mxu0 0
        %593 = vmatpush1.bf16.xpose.msra.mxu0 0
        %594 = vmatprep.subr.bf16.mxu0 0
        %595 = vmatpush1.bf16.xpose.msra.mxu0 0
        %596 = vmatprep.subr.bf16.mxu0 0
        %597 = vmatpush1.bf16.xpose.msra.mxu0 0
        %598 = vmatprep.subr.bf16.mxu0 0
        %599 = vmatpush1.bf16.xpose.msra.mxu0 0
        %600 = vmatprep.subr.bf16.mxu0 0
        %601 = vmatpush1.bf16.xpose.msra.mxu0 0
        %602 = vmatprep.subr.bf16.mxu0 0
        %603 = vmatpush1.bf16.xpose.msra.mxu0 0
        %604 = vmatprep.subr.bf16.mxu0 0
        %605 = vmatpush1.bf16.xpose.msra.mxu0 %v588
        %606 = vmatprep.subr.bf16.mxu0 0
        %607 = vmatpush2.bf16.xpose.msra.mxu0 0
        %608 = vmatprep.subr.bf16.mxu0 0
        %609 = vmatpush2.bf16.xpose.msra.mxu0 0
        %610 = vmatprep.subr.bf16.mxu0 0
        %611 = vmatpush2.bf16.xpose.msra.mxu0 0
        %612 = vmatprep.subr.bf16.mxu0 0
        %613 = vmatpush2.bf16.xpose.msra.mxu0 0
        %614 = vmatprep.subr.bf16.mxu0 0
        %615 = vmatpush2.bf16.xpose.msra.mxu0 0
        %616 = vmatprep.subr.bf16.mxu0 0
        %617 = vmatpush2.bf16.xpose.msra.mxu0 0
        %618 = vmatprep.subr.bf16.mxu0 0
        %619 = vmatpush2.bf16.xpose.msra.mxu0 0
        %620 = vmatprep.subr.bf16.mxu0 0
        %621 = vmatpush2.bf16.xpose.msra.mxu0 0
        %622 = vmatprep.mubr.bf16.mxu0 0
        %623 = vmatmul.mubr.bf16.gmra.mxu0 %v585
        %v624 = vpop.f32.mrf.mxu0
        %v625 = vadd.f32 0.0, %v624
        %v626 = vpop.f32.mrf.mxu0
        %v627 = vpop.f32.mrf.mxu0
        %v628 = vpop.f32.mrf.mxu0
        %629 = vdwg.mxu0
        %v630 = vld [vmem:[#allocation3] sm:$0xff]
        %vm631 = vcmask 64512
        %v632 = vsel %vm631, %v625, -inf
        %633 = vmax.xlane.f32.xlu0 %v632
        %v634 = vpop.xlane.xlu0 %633
        %v635 = vmax.f32 %v630, %v634
        %v636 = vsub.f32 %v630, %v635
        %v637 = vmul.f32 %v636, 1.442695
        %v638 = vpow.pop %v637
        %640 = vset.pattern.permute.xlu0 0
        %641 = vperm.xlu0 %640, %v635
        %v642 = vpop.permute.xlu0 %641
        %v644 = vsub.f32 %v625, %v642
        %v645 = vmul.f32 %v644, 1.442695
        %v646 = vpow.pop %v645
        %v647 = vld [vmem:[#allocation4] sm:$0xff]
        %v648 = vmul.f32 %v638, %v647
        %v649 = vsel %vm631, %v646, 0.0
        %650 = vadd.xlane.f32.xlu0 %v649
        %v651 = vpop.xlane.xlu0 %650
        %v652 = vadd.f32 %v648, %v651
        %vm653 = vcmask 7168
        %654 = vst.msk [vmem:[#allocation4] sm:$0xff] %vm653, %v652
        %v655 = vld [vmem:[#allocation5] sm:$0xff]
        %657 = vset.pattern.permute.xlu0 0
        %658 = vperm.xlu0 %657, %v638
        %v659 = vpop.permute.xlu0 %658
        %v661 = vmul.f32 %v659, %v655
        %v662 = vpack.c.bf16 %v646, %v646
        %664 = vrot.lane.b32.xlu0 %v581, 96
        %v665 = vpop.permute.xlu0 %664
        %v667 = vsel %vm631, %v662, 0
        %vm669 = vcmask 1043456
        %v671 = vsel %vm669, %v665, 0
        %673 = vmatprep.subr.bf16.mxu0 0
        %674 = vmatpush1.bf16.msra.mxu0 0
        %675 = vmatprep.subr.bf16.mxu0 0
        %676 = vmatpush1.bf16.msra.mxu0 0
        %677 = vmatprep.subr.bf16.mxu0 0
        %678 = vmatpush1.bf16.msra.mxu0 0
        %679 = vmatprep.subr.bf16.mxu0 0
        %680 = vmatpush1.bf16.msra.mxu0 0
        %681 = vmatprep.subr.bf16.mxu0 0
        %682 = vmatpush1.bf16.msra.mxu0 0
        %683 = vmatprep.subr.bf16.mxu0 0
        %684 = vmatpush1.bf16.msra.mxu0 0
        %685 = vmatprep.subr.bf16.mxu0 0
        %686 = vmatpush1.bf16.msra.mxu0 0
        %687 = vmatprep.subr.bf16.mxu0 0
        %688 = vmatpush1.bf16.msra.mxu0 %v671
        %689 = vmatprep.subr.bf16.mxu0 0
        %690 = vmatpush2.bf16.msra.mxu0 0
        %691 = vmatprep.subr.bf16.mxu0 0
        %692 = vmatpush2.bf16.msra.mxu0 0
        %693 = vmatprep.subr.bf16.mxu0 0
        %694 = vmatpush2.bf16.msra.mxu0 0
        %695 = vmatprep.subr.bf16.mxu0 0
        %696 = vmatpush2.bf16.msra.mxu0 0
        %697 = vmatprep.subr.bf16.mxu0 0
        %698 = vmatpush2.bf16.msra.mxu0 0
        %699 = vmatprep.subr.bf16.mxu0 0
        %700 = vmatpush2.bf16.msra.mxu0 0
        %701 = vmatprep.subr.bf16.mxu0 0
        %702 = vmatpush2.bf16.msra.mxu0 0
        %703 = vmatprep.subr.bf16.mxu0 0
        %704 = vmatpush2.bf16.msra.mxu0 0
        %705 = vmatprep.mubr.bf16.mxu0 0
        %706 = vmatmul.mubr.bf16.gmra.mxu0 %v667
        %v707 = vpop.f32.mrf.mxu0
        %v708 = vadd.f32 0.0, %v707
        %v709 = vpop.f32.mrf.mxu0
        %v710 = vpop.f32.mrf.mxu0
        %v711 = vpop.f32.mrf.mxu0
        %712 = vdwg.mxu0
        %v713 = vadd.f32 %v661, %v708
        %714 = vst.msk [vmem:[#allocation5] sm:$0xff] %vm583, %v713
        %715 = vst.msk [vmem:[#allocation3] sm:$0xff] %vm653, %v635
        %v716 = vld [vmem:[#allocation2] sm:$0xf]
        %v718 = vunpack.c.l.b16 %v716
        %v719 = vpack.c.b16 %v718, %v718
        %720 = vrot.lane.b32.xlu0 %v719, 112
        %v721 = vpop.permute.xlu0 %720
        %722 = vrot.lane.b32.xlu0 %v581, 112
        %v723 = vpop.permute.xlu0 %722
        %v725 = vsel %vm583, %v721, 0
        %v728 = vsel %vm583, %v723, 0
        %730 = vmatprep.subr.bf16.mxu0 0
        %731 = vmatpush1.bf16.xpose.msra.mxu0 0
        %732 = vmatprep.subr.bf16.mxu0 0
        %733 = vmatpush1.bf16.xpose.msra.mxu0 0
        %734 = vmatprep.subr.bf16.mxu0 0
        %735 = vmatpush1.bf16.xpose.msra.mxu0 0
        %736 = vmatprep.subr.bf16.mxu0 0
        %737 = vmatpush1.bf16.xpose.msra.mxu0 0
        %738 = vmatprep.subr.bf16.mxu0 0
        %739 = vmatpush1.bf16.xpose.msra.mxu0 0
        %740 = vmatprep.subr.bf16.mxu0 0
        %741 = vmatpush1.bf16.xpose.msra.mxu0 0
        %742 = vmatprep.subr.bf16.mxu0 0
        %743 = vmatpush1.bf16.xpose.msra.mxu0 0
        %744 = vmatprep.subr.bf16.mxu0 0
        %745 = vmatpush1.bf16.xpose.msra.mxu0 %v728
        %746 = vmatprep.subr.bf16.mxu0 0
        %747 = vmatpush2.bf16.xpose.msra.mxu0 0
        %748 = vmatprep.subr.bf16.mxu0 0
        %749 = vmatpush2.bf16.xpose.msra.mxu0 0
        %750 = vmatprep.subr.bf16.mxu0 0
        %751 = vmatpush2.bf16.xpose.msra.mxu0 0
        %752 = vmatprep.subr.bf16.mxu0 0
        %753 = vmatpush2.bf16.xpose.msra.mxu0 0
        %754 = vmatprep.subr.bf16.mxu0 0
        %755 = vmatpush2.bf16.xpose.msra.mxu0 0
        %756 = vmatprep.subr.bf16.mxu0 0
        %757 = vmatpush2.bf16.xpose.msra.mxu0 0
        %758 = vmatprep.subr.bf16.mxu0 0
        %759 = vmatpush2.bf16.xpose.msra.mxu0 0
        %760 = vmatprep.subr.bf16.mxu0 0
        %761 = vmatpush2.bf16.xpose.msra.mxu0 0
        %762 = vmatprep.mubr.bf16.mxu0 0
        %763 = vmatmul.mubr.bf16.gmra.mxu0 %v725
        %v764 = vpop.f32.mrf.mxu0
        %v765 = vadd.f32 0.0, %v764
        %v766 = vpop.f32.mrf.mxu0
        %v767 = vpop.f32.mrf.mxu0
        %v768 = vpop.f32.mrf.mxu0
        %769 = vdwg.mxu0
        %s770 = scalar_lea.vmem [#allocation3], 8
        %v771 = vld [vmem:[%s770] sm:$0xff]
        %v772 = vsel %vm631, %v765, -inf
        %773 = vmax.xlane.f32.xlu0 %v772
        %v774 = vpop.xlane.xlu0 %773
        %v775 = vmax.f32 %v771, %v774
        %v776 = vsub.f32 %v771, %v775
        %v777 = vmul.f32 %v776, 1.442695
        %v778 = vpow.pop %v777
        %780 = vset.pattern.permute.xlu0 0
        %781 = vperm.xlu0 %780, %v775
        %v782 = vpop.permute.xlu0 %781
        %v784 = vsub.f32 %v765, %v782
        %v785 = vmul.f32 %v784, 1.442695
        %v786 = vpow.pop %v785
        %s787 = scalar_lea.vmem [#allocation4], 8
        %v788 = vld [vmem:[%s787] sm:$0xff]
        %v789 = vmul.f32 %v778, %v788
        %v790 = vsel %vm631, %v786, 0.0
        %791 = vadd.xlane.f32.xlu0 %v790
        %v792 = vpop.xlane.xlu0 %791
        %v793 = vadd.f32 %v789, %v792
        %794 = vst.msk [vmem:[%s787] sm:$0xff] %vm653, %v793
        %s795 = scalar_lea.vmem [#allocation5], 8
        %v796 = vld [vmem:[%s795] sm:$0xff]
        %798 = vset.pattern.permute.xlu0 0
        %799 = vperm.xlu0 %798, %v778
        %v800 = vpop.permute.xlu0 %799
        %v802 = vmul.f32 %v800, %v796
        %v803 = vpack.c.bf16 %v786, %v786
        %804 = vrot.lane.b32.xlu0 %v581, 80
        %v805 = vpop.permute.xlu0 %804
        %v807 = vsel %vm631, %v803, 0
        %v810 = vsel %vm669, %v805, 0
        %812 = vmatprep.subr.bf16.mxu0 0
        %813 = vmatpush1.bf16.msra.mxu0 0
        %814 = vmatprep.subr.bf16.mxu0 0
        %815 = vmatpush1.bf16.msra.mxu0 0
        %816 = vmatprep.subr.bf16.mxu0 0
        %817 = vmatpush1.bf16.msra.mxu0 0
        %818 = vmatprep.subr.bf16.mxu0 0
        %819 = vmatpush1.bf16.msra.mxu0 0
        %820 = vmatprep.subr.bf16.mxu0 0
        %821 = vmatpush1.bf16.msra.mxu0 0
        %822 = vmatprep.subr.bf16.mxu0 0
        %823 = vmatpush1.bf16.msra.mxu0 0
        %824 = vmatprep.subr.bf16.mxu0 0
        %825 = vmatpush1.bf16.msra.mxu0 0
        %826 = vmatprep.subr.bf16.mxu0 0
        %827 = vmatpush1.bf16.msra.mxu0 %v810
        %828 = vmatprep.subr.bf16.mxu0 0
        %829 = vmatpush2.bf16.msra.mxu0 0
        %830 = vmatprep.subr.bf16.mxu0 0
        %831 = vmatpush2.bf16.msra.mxu0 0
        %832 = vmatprep.subr.bf16.mxu0 0
        %833 = vmatpush2.bf16.msra.mxu0 0
        %834 = vmatprep.subr.bf16.mxu0 0
        %835 = vmatpush2.bf16.msra.mxu0 0
        %836 = vmatprep.subr.bf16.mxu0 0
        %837 = vmatpush2.bf16.msra.mxu0 0
        %838 = vmatprep.subr.bf16.mxu0 0
        %839 = vmatpush2.bf16.msra.mxu0 0
        %840 = vmatprep.subr.bf16.mxu0 0
        %841 = vmatpush2.bf16.msra.mxu0 0
        %842 = vmatprep.subr.bf16.mxu0 0
        %843 = vmatpush2.bf16.msra.mxu0 0
        %844 = vmatprep.mubr.bf16.mxu0 0
        %845 = vmatmul.mubr.bf16.gmra.mxu0 %v807
        %v846 = vpop.f32.mrf.mxu0
        %v847 = vadd.f32 0.0, %v846
        %v848 = vpop.f32.mrf.mxu0
        %v849 = vpop.f32.mrf.mxu0
        %v850 = vpop.f32.mrf.mxu0
        %851 = vdwg.mxu0
        %v852 = vadd.f32 %v802, %v847
        %853 = vst.msk [vmem:[%s795] sm:$0xff] %vm583, %v852
        %854 = vst.msk [vmem:[%s770] sm:$0xff] %vm653, %v775
        // Predicated region
        $region77: #{tpu_custom_call.1} parent=51 // pred_check
          %p855 = pneg %p429
        $region78: #{tpu_custom_call.1} parent=51 // pred_check_branch
          %857 = sbr.rel (%p855) target = $region80
        $region79: #{tpu_custom_call.1} parent=51 // pred_region
          %v858 = vld [vmem:[#allocation4] sm:$0xff]
          %v859 = vrcp.pop %v858
          %v860 = vld [vmem:[#allocation5] sm:$0xff]
          %862 = vset.pattern.permute.xlu0 0
          %863 = vperm.xlu0 %862, %v859
          %v864 = vpop.permute.xlu0 %863
          %v866 = vmul.f32 %v860, %v864
          %v867 = vpack.c.bf16 %v866, %v866
          %v868 = vld [vmem:[#allocation14] sm:$0xf]
          %v869 = vld [vmem:[#allocation14 + $0x4] sm:$0xf]
          %v870 = vld [vmem:[%s787] sm:$0xff]
          %v871 = vrcp.pop %v870
          %v872 = vld [vmem:[%s795] sm:$0xff]
          %874 = vset.pattern.permute.xlu0 0
          %875 = vperm.xlu0 %874, %v871
          %v876 = vpop.permute.xlu0 %875
          %v878 = vmul.f32 %v872, %v876
          %v879 = vpack.c.bf16 %v878, %v878
          %s880 = scalar_lea.vmem [#allocation14], 8
          %v881 = vld [vmem:[%s880] sm:$0xf]
          %v882 = vld [vmem:[%s880 + $0x4] sm:$0xf]
          %v885 = vunpack.c.l.b16 %v881
          %v886 = vunpack.c.l.b16 %v882
          %v887 = vpack.c.b16 %v886, %v885
          %v890 = vsel %vm583, %v879, 0
          %892 = vmatprep.subr.bf16.mxu0 0
          %893 = vmatpush1.bf16.msra.mxu0 0
          %894 = vmatprep.subr.bf16.mxu0 0
          %895 = vmatpush1.bf16.msra.mxu0 0
          %896 = vmatprep.subr.bf16.mxu0 0
          %897 = vmatpush1.bf16.msra.mxu0 0
          %898 = vmatprep.subr.bf16.mxu0 0
          %899 = vmatpush1.bf16.msra.mxu0 0
          %900 = vmatprep.subr.bf16.mxu0 0
          %901 = vmatpush1.bf16.msra.mxu0 0
          %902 = vmatprep.subr.bf16.mxu0 0
          %903 = vmatpush1.bf16.msra.mxu0 0
          %904 = vmatprep.subr.bf16.mxu0 0
          %905 = vmatpush1.bf16.msra.mxu0 0
          %906 = vmatprep.subr.bf16.mxu0 0
          %907 = vmatpush1.bf16.msra.mxu0 %v887
          %908 = vmatprep.subr.bf16.mxu0 0
          %909 = vmatpush2.bf16.msra.mxu0 0
          %910 = vmatprep.subr.bf16.mxu0 0
          %911 = vmatpush2.bf16.msra.mxu0 0
          %912 = vmatprep.subr.bf16.mxu0 0
          %913 = vmatpush2.bf16.msra.mxu0 0
          %914 = vmatprep.subr.bf16.mxu0 0
          %915 = vmatpush2.bf16.msra.mxu0 0
          %916 = vmatprep.subr.bf16.mxu0 0
          %917 = vmatpush2.bf16.msra.mxu0 0
          %918 = vmatprep.subr.bf16.mxu0 0
          %919 = vmatpush2.bf16.msra.mxu0 0
          %920 = vmatprep.subr.bf16.mxu0 0
          %921 = vmatpush2.bf16.msra.mxu0 0
          %922 = vmatprep.subr.bf16.mxu0 0
          %923 = vmatpush2.bf16.msra.mxu0 0
          %924 = vmatprep.mubr.bf16.mxu0 0
          %925 = vmatmul.mubr.bf16.gmra.mxu0 %v890
          %v926 = vpop.f32.mrf.mxu0
          %v927 = vadd.f32 0.0, %v926
          %v928 = vpop.f32.mrf.mxu0
          %v929 = vpop.f32.mrf.mxu0
          %v930 = vpop.f32.mrf.mxu0
          %931 = vdwg.mxu0
          %v934 = vunpack.c.l.b16 %v868
          %v935 = vunpack.c.l.b16 %v869
          %v936 = vpack.c.b16 %v935, %v934
          %v939 = vsel %vm583, %v867, 0
          %941 = vmatprep.subr.bf16.mxu0 0
          %942 = vmatpush1.bf16.msra.mxu0 0
          %943 = vmatprep.subr.bf16.mxu0 0
          %944 = vmatpush1.bf16.msra.mxu0 0
          %945 = vmatprep.subr.bf16.mxu0 0
          %946 = vmatpush1.bf16.msra.mxu0 0
          %947 = vmatprep.subr.bf16.mxu0 0
          %948 = vmatpush1.bf16.msra.mxu0 0
          %949 = vmatprep.subr.bf16.mxu0 0
          %950 = vmatpush1.bf16.msra.mxu0 0
          %951 = vmatprep.subr.bf16.mxu0 0
          %952 = vmatpush1.bf16.msra.mxu0 0
          %953 = vmatprep.subr.bf16.mxu0 0
          %954 = vmatpush1.bf16.msra.mxu0 0
          %955 = vmatprep.subr.bf16.mxu0 0
          %956 = vmatpush1.bf16.msra.mxu0 %v936
          %957 = vmatprep.subr.bf16.mxu0 0
          %958 = vmatpush2.bf16.msra.mxu0 0
          %959 = vmatprep.subr.bf16.mxu0 0
          %960 = vmatpush2.bf16.msra.mxu0 0
          %961 = vmatprep.subr.bf16.mxu0 0
          %962 = vmatpush2.bf16.msra.mxu0 0
          %963 = vmatprep.subr.bf16.mxu0 0
          %964 = vmatpush2.bf16.msra.mxu0 0
          %965 = vmatprep.subr.bf16.mxu0 0
          %966 = vmatpush2.bf16.msra.mxu0 0
          %967 = vmatprep.subr.bf16.mxu0 0
          %968 = vmatpush2.bf16.msra.mxu0 0
          %969 = vmatprep.subr.bf16.mxu0 0
          %970 = vmatpush2.bf16.msra.mxu0 0
          %971 = vmatprep.subr.bf16.mxu0 0
          %972 = vmatpush2.bf16.msra.mxu0 0
          %973 = vmatprep.mubr.bf16.mxu0 0
          %974 = vmatmul.mubr.bf16.gmra.mxu0 %v939
          %v975 = vpop.f32.mrf.mxu0
          %v976 = vadd.f32 %v927, %v975
          %v977 = vpop.f32.mrf.mxu0
          %v978 = vpop.f32.mrf.mxu0
          %v979 = vpop.f32.mrf.mxu0
          %980 = vdwg.mxu0
          %v981 = vld [vmem:[%s7] sm:$0x1]
          %v983 = vlaneseq
          %v984 = vshrl.u32 %v983, 7
          %v985 = vsub.s32 0, %v984
          %v986 = vrot.slane %v981, %v985
          %v988 = vadd.f32 %v976, %v986
          %989 = vst.msk [vmem:[%s427] sm:$0xff] %vm537, %v988
        $region80: #{tpu_custom_call.1} parent=51 // pred_fallthru
          _
        %s990 = sand.u32 %s240, 1
        %s991 = scalar_lea.sflag [#allocation8], %s990
        %s992 = sand.u32 %s240, 1
        %s993 = smul.addr %s992, 8
        %s994 = scalar_lea.vmem [#allocation15], %s993
        // Predicated region
        $region81: #{tpu_custom_call.1} parent=51 // pred_check
          %p995 = pneg %p250
        $region82: #{tpu_custom_call.1} parent=51 // pred_check_branch
          %997 = sbr.rel (%p995) target = $region84
        $region83: #{tpu_custom_call.1} parent=51 // pred_region
          %s999 = ssub.s32 128, 128
          %1000 = vsyncadd %s991, %s999
          %s1001 = sadd.s32 %s35, %s34
          %s1002 = smul.addr %s1001, 128
          %s1003 = scalar_lea.hbm %s8, %s1002
          %s1005 = sshll.u32 %s994, 4
          %s1006 = int_to_ptr.vmem [resolvable:$true] %s1005
          %1008 = dma.vmem_to_hbm [thread:$0]  %s1006, 128, %s1003, %s991
        $region84: #{tpu_custom_call.1} parent=51 // pred_fallthru
          _
      $region52: #{tpu_custom_call.1} parent=5 // pred_fallthru
        _
      %p1009 = scmp.le.s32.totalorder 2, %s24
      // Predicated region
      $region85: #{tpu_custom_call.1} parent=5 // pred_check
        %p1010 = pneg %p1009
      $region86: #{tpu_custom_call.1} parent=5 // pred_check_branch
        %1012 = sbr.rel (%p1010) target = $region88
      $region87: #{tpu_custom_call.1} parent=5 // pred_region
        %s1013 = ssub.s32 %s24, 2
        // Predicated region
        $region89: #{tpu_custom_call.1} parent=87 // pred_check
          %p1014 = pneg %p256
        $region90: #{tpu_custom_call.1} parent=87 // pred_check_branch
          %1016 = sbr.rel (%p1014) target = $region92
        $region91: #{tpu_custom_call.1} parent=87 // pred_region
          %s1017 = sand.u32 %s241, 1
          %s1018 = scalar_lea.sflag [#allocation8], %s1017
          %s1019 = sand.u32 %s241, 1
          %s1020 = smul.addr %s1019, 8
          %s1021 = scalar_lea.vmem [#allocation15], %s1020
          %1022 = dma.done %s1018, 128
        $region92: #{tpu_custom_call.1} parent=87 // pred_fallthru
          _
      $region88: #{tpu_custom_call.1} parent=5 // pred_fallthru
        _
    $region6: #{tpu_custom_call.1} parent=1 // loop_footer
      %s28 = sadd.s32 1, %s24
    $region7: #{tpu_custom_call.1} parent=1 // loop_footer_branch
      %23 = sbr.rel target = $region3
    $region8: #{tpu_custom_call.1} parent=1 // loop_exit
      _
    %1023 = vsyncpa [#allocation7], 1
    %s1024 = scalar_lea.sflag [#allocation7], 1
    %1025 = vsyncpa %s1024, 1
    %1026 = vsyncpa [#allocation10], 1
    %s1027 = scalar_lea.sflag [#allocation10], 1
    %1028 = vsyncpa %s1027, 1
    %1029 = vsyncpa [#allocation13], 1
    %1030 = vsyncpa [#allocation8], 1
    %s1031 = scalar_lea.sflag [#allocation8], 1
    %1032 = vsyncpa %s1031, 1

</llo_original>
